<compile_context>
chip_gen: v5e
topology: v5e:2x2
jax: 0.10.0
libtpu: 0.0.40
codegen_flags: <defaults>
</compile_context>

<pallas_src>
import functools

import jax
import jax.numpy as jnp
from jax.experimental import pallas as pl
from jax.experimental.pallas import tpu as pltpu

_MM_DTYPE = jnp.bfloat16          # MXU input dtype (f32 accumulation requested)
_VMEM_LIMIT = 48 * 1024 * 1024    # > v5e/v6e scoped defaults, < v7x 64 MiB phys.


# ------------------------------ shared helpers -------------------------------
def _layer_norm(x, gamma, beta, eps=1e-5):
    """torch.nn.LayerNorm semantics (biased variance, eps inside sqrt), f32."""
    inv_n = jnp.float32(1.0 / x.shape[-1])
    mean = jnp.sum(x, axis=-1, keepdims=True) * inv_n
    xc = x - mean
    var = jnp.sum(xc * xc, axis=-1, keepdims=True) * inv_n
    return xc * jax.lax.rsqrt(var + eps) * gamma + beta


def _pick_row_tile(n_rows, target=512):
    """Largest power-of-two multiple-of-8 divisor of n_rows <= target (else full)."""
    if n_rows % 8 != 0:
        return n_rows
    best, t = None, 8
    while t <= min(n_rows, target):
        if n_rows % t == 0:
            best = t
        t *= 2
    return best if best is not None else n_rows


def _pick_lane_tile(n, target=2048):
    """Largest multiple-of-128 divisor of n <= target, else n itself (full dim)."""
    if n <= target:
        return n
    best = None
    for t in range(128, target + 1, 128):
        if n % t == 0:
            best = t
    return best if best is not None else n


# -------------------- fused attention decoder-block kernel -------------------
def _attn_block_kernel(x_ref, wqkv_ref, ln1_g_ref, ln1_b_ref,
                       lnm_g_ref, lnm_b_ref, o_ref, attn_sc, *, n_heads):
    x = x_ref[0].astype(jnp.float32)                               # (T, E)
    t, e = x.shape
    hs = e // n_heads

    # LN1 (DecoderBlock.layer_norm), f32 stats.
    z = _layer_norm(x, ln1_g_ref[...], ln1_b_ref[...])             # (T, E)

    # One lane-dense QKV matmul.  wqkv is pre-cast to bf16 at init and its Q
    # columns already carry 1/sqrt(hs): no weight cast / scale mul per step.
    qkv = jnp.dot(z.astype(_MM_DTYPE), wqkv_ref[...],
                  preferred_element_type=jnp.float32)              # (T, 3E)
    qkv = qkv.astype(_MM_DTYPE)                                    # bf16 activation

    row = jax.lax.broadcasted_iota(jnp.int32, (t, t), 0)
    col = jax.lax.broadcasted_iota(jnp.int32, (t, t), 1)
    causal = col <= row
    neg = jnp.float32(-1e30)                                       # finite mask

    # TODO(synk): for T >= ~1k switch to a q-tiled grid axis + kv-tiled online
    # softmax (flash) with heads batched in one dot_general and fully-masked KV
    # tiles skipped; at this scale full (T, T) per-head scores fit VMEM.
    for h in range(n_heads):                                       # static unroll
        qh = qkv[:, h * hs:(h + 1) * hs]
        kh = qkv[:, e + h * hs:e + (h + 1) * hs]
        vh = qkv[:, 2 * e + h * hs:2 * e + (h + 1) * hs]
        # q @ k^T via contraction dims (no materialized transpose).
        s = jax.lax.dot_general(qh, kh, (((1,), (1,)), ((), ())),
                                preferred_element_type=jnp.float32)  # (T, T)
        s = jnp.where(causal, s, neg)
        s = s - jnp.max(s, axis=-1, keepdims=True)
        # f32 exp (v5e has no bf16 EUP). TODO(synk): bf16 exp on v6e/v7x.
        p = jnp.exp(s)
        p = p * pl.reciprocal(jnp.sum(p, axis=-1, keepdims=True), approx=True)
        # Write this head's (T, hs) output straight into its lane slice of the
        # (T, E) scratch: no lane-axis concat, per-head live ranges bounded.
        attn_sc[:, h * hs:(h + 1) * hs] = jnp.dot(
            p.astype(_MM_DTYPE), vh, preferred_element_type=jnp.float32)

    # MHA: LN_mha(z + cat(heads)); block residual: x + MHA(LN1(x)).
    mha = _layer_norm(z + attn_sc[...], lnm_g_ref[...], lnm_b_ref[...])
    o_ref[0] = (x + mha).astype(o_ref.dtype)


def attention_block(x, blk, n_heads):
    B, T, E = x.shape
    # TODO(synk): add a q-tile "parallel" grid axis so both v7x TensorCores
    # have work when B is 1 or odd (costs KV-projection recompute per q tile).
    return pl.pallas_call(
        functools.partial(_attn_block_kernel, n_heads=n_heads),
        out_shape=jax.ShapeDtypeStruct((B, T, E), x.dtype),
        grid=(B,),
        in_specs=[
            pl.BlockSpec((1, T, E), lambda b: (b, 0, 0)),
            # grid-invariant bf16 weight: single-buffer it (no 2x VMEM copy).
            pl.BlockSpec((E, 3 * E), lambda b: (0, 0),
                         pipeline_mode=pl.Buffered(1)),
            pl.BlockSpec((1, E), lambda b: (0, 0)),
            pl.BlockSpec((1, E), lambda b: (0, 0)),
            pl.BlockSpec((1, E), lambda b: (0, 0)),
            pl.BlockSpec((1, E), lambda b: (0, 0)),
        ],
        out_specs=pl.BlockSpec((1, T, E), lambda b: (b, 0, 0)),
        scratch_shapes=[pltpu.VMEM((T, E), jnp.float32)],
        compiler_params=pltpu.CompilerParams(
            dimension_semantics=("parallel",),
            vmem_limit_bytes=_VMEM_LIMIT),
    )(x, blk["wqkv"], blk["ln1_g"], blk["ln1_b"],
      blk["ln_mha_g"], blk["ln_mha_b"])


# ------------------------- fused FFN decoder-block kernel --------------------
def _ffn_block_kernel(x_ref, g_ref, b_ref, w1_ref, b1_ref, w2_ref, b2_ref,
                      o_ref, z_sc, acc_sc):
    k = pl.program_id(1)

    @pl.when(k == 0)
    def _():
        xf = x_ref[...].astype(jnp.float32)
        z_sc[...] = _layer_norm(xf, g_ref[...], b_ref[...]).astype(_MM_DTYPE)
        acc_sc[...] = jnp.zeros_like(acc_sc)

    # K-tiled: relu(z @ w1[:, k-tile] + b1[k-tile]) @ w2[k-tile, :] accumulated
    # in f32 scratch (bounds VMEM to ~rows*E + 2*E*TILE_H regardless of E).
    h = jnp.dot(z_sc[...], w1_ref[...],
                preferred_element_type=jnp.float32) + b1_ref[...]
    h = jnp.maximum(h, 0.0)                                         # ReLU
    acc_sc[...] += jnp.dot(h.astype(_MM_DTYPE), w2_ref[...],
                           preferred_element_type=jnp.float32)

    @pl.when(k == pl.num_programs(1) - 1)
    def _():
        xf = x_ref[...].astype(jnp.float32)
        # TODO(synk): Dropout(0.2) is identity here (eval / disable_dropout()).
        o_ref[...] = (xf + acc_sc[...] + b2_ref[...]).astype(o_ref.dtype)


def ffn_block(x, blk):
    B, T, E = x.shape
    Hf = blk["w1"].shape[1]
    x2 = x.reshape(B * T, E)
    rows = _pick_row_tile(B * T)
    th = _pick_lane_tile(Hf, 512)
    out = pl.pallas_call(
        _ffn_block_kernel,
        out_shape=jax.ShapeDtypeStruct((B * T, E), x.dtype),
        grid=(B * T // rows, Hf // th),
        in_specs=[
            pl.BlockSpec((rows, E), lambda i, k: (i, 0)),
            pl.BlockSpec((1, E), lambda i, k: (0, 0)),
            pl.BlockSpec((1, E), lambda i, k: (0, 0)),
            pl.BlockSpec((E, th), lambda i, k: (0, k)),
            pl.BlockSpec((1, th), lambda i, k: (0, k)),
            pl.BlockSpec((th, E), lambda i, k: (k, 0)),
            pl.BlockSpec((1, E), lambda i, k: (0, 0)),
        ],
        out_specs=pl.BlockSpec((rows, E), lambda i, k: (i, 0)),
        scratch_shapes=[pltpu.VMEM((rows, E), _MM_DTYPE),      # LN2(x) cache
                        pltpu.VMEM((rows, E), jnp.float32)],   # f32 accumulator
        compiler_params=pltpu.CompilerParams(
            dimension_semantics=("parallel", "arbitrary"),
            vmem_limit_bytes=_VMEM_LIMIT),
    )(x2, blk["ln2_g"], blk["ln2_b"], blk["w1"], blk["b1"], blk["w2"], blk["b2"])
    return out.reshape(B, T, E)


# ----------------------- fused final LayerNorm + LM head ---------------------
def _lm_head_kernel(x_ref, g_ref, b_ref, w_ref, bo_ref, o_ref, z_sc):
    j = pl.program_id(1)

    @pl.when(j == 0)
    def _():
        xf = x_ref[...].astype(jnp.float32)
        z_sc[...] = _layer_norm(xf, g_ref[...], b_ref[...]).astype(_MM_DTYPE)

    o_ref[...] = (jnp.dot(z_sc[...], w_ref[...],
                          preferred_element_type=jnp.float32)
                  + bo_ref[...]).astype(o_ref.dtype)


def lm_head(x, params):
    B, T, E = x.shape
    V = params["w_out"].shape[1]
    x2 = x.reshape(B * T, E)
    rows = _pick_row_tile(B * T)
    tv = _pick_lane_tile(V, 2048)   # vocab tiling: weight stream fits any VMEM
    out = pl.pallas_call(
        _lm_head_kernel,
        out_shape=jax.ShapeDtypeStruct((B * T, V), x.dtype),
        grid=(B * T // rows, V // tv),
        in_specs=[
            pl.BlockSpec((rows, E), lambda i, j: (i, 0)),
            pl.BlockSpec((1, E), lambda i, j: (0, 0)),
            pl.BlockSpec((1, E), lambda i, j: (0, 0)),
            pl.BlockSpec((E, tv), lambda i, j: (0, j)),
            pl.BlockSpec((1, tv), lambda i, j: (0, j)),
        ],
        out_specs=pl.BlockSpec((rows, tv), lambda i, j: (i, j)),
        scratch_shapes=[pltpu.VMEM((rows, E), _MM_DTYPE)],     # LN(x) cache
        compiler_params=pltpu.CompilerParams(
            dimension_semantics=("parallel", "arbitrary"),
            vmem_limit_bytes=_VMEM_LIMIT),
    )(x2, params["lln_g"], params["lln_b"], params["w_out"], params["b_out"])
    return out.reshape(B, T, V)


# ------------------------------ Model assembly -------------------------------
def init_params(key, *, vocab, E, block_size, H, hs, n_blocks):
    keys = jax.random.split(key, 3 + n_blocks)
    params = {
        "tok_emb": 0.02 * jax.random.normal(keys[0], (vocab, E), jnp.float32),
        "pos_emb": 0.02 * jax.random.normal(keys[1], (block_size, E), jnp.float32),
        "lln_g": jnp.ones((1, E), jnp.float32),
        "lln_b": jnp.zeros((1, E), jnp.float32),
        "w_out": (0.1 * jax.random.normal(keys[2], (E, vocab), jnp.float32)
                  ).astype(_MM_DTYPE),
        "b_out": jnp.zeros((1, vocab), jnp.float32),
        "blocks": [],
    }
    scale = float(hs) ** (-0.5)
    for i in range(n_blocks):
        bk = jax.random.split(keys[3 + i], 5)
        # Per-head projections (H, E, hs) == torch Linear weight.T per head,
        # stacked lane-dense into one (E, 3*H*hs) QKV matrix; columns
        # [h*hs:(h+1)*hs] of each E-wide section belong to head h, matching
        # torch.cat([head(x) for head in heads], dim=-1).
        wq = 0.1 * jax.random.normal(bk[0], (H, E, hs), jnp.float32)
        wk = 0.1 * jax.random.normal(bk[1], (H, E, hs), jnp.float32)
        wv = 0.1 * jax.random.normal(bk[2], (H, E, hs), jnp.float32)
        stack = lambda w: w.transpose(1, 0, 2).reshape(E, H * hs)
        # Fold 1/sqrt(hs) into the Q columns, then pre-cast the whole thing.
        wqkv = jnp.concatenate([stack(wq) * scale, stack(wk), stack(wv)], axis=1)
        params["blocks"].append(dict(
            wqkv=wqkv.astype(_MM_DTYPE),
            ln1_g=jnp.ones((1, E), jnp.float32), ln1_b=jnp.zeros((1, E), jnp.float32),
            ln_mha_g=jnp.ones((1, E), jnp.float32), ln_mha_b=jnp.zeros((1, E), jnp.float32),
            ln2_g=jnp.ones((1, E), jnp.float32), ln2_b=jnp.zeros((1, E), jnp.float32),
            w1=(0.1 * jax.random.normal(bk[3], (E, 4 * E), jnp.float32)
                ).astype(_MM_DTYPE),
            b1=jnp.zeros((1, 4 * E), jnp.float32),
            w2=(0.1 * jax.random.normal(bk[4], (4 * E, E), jnp.float32)
                ).astype(_MM_DTYPE),
            b2=jnp.zeros((1, E), jnp.float32),
        ))
    return params


def decoder_trans_forward(params, x_ids, *, n_heads):
    """DecoderTrans('forward', x=x_ids, y=None) -> logits (loss path omitted).

    The inter-block activation is carried in f32 for parity with the torch
    reference; carrying it in bf16 would halve its HBM traffic (gated choice).
    """
    B, T = x_ids.shape
    x = params["tok_emb"][x_ids] + params["pos_emb"][:T]            # (B, T, E)
    for blk in params["blocks"]:
        x = attention_block(x, blk, n_heads)   # x + LN_mha(LN1(x) + MHA(LN1(x)))
        x = ffn_block(x, blk)                  # x + FFW(LN2(x))
    return lm_head(x, params)                  # LN_final + output linear


if __name__ == "__main__":
    # Small config consistent with the module: vocab=16, E=32, block_size(T)=8,
    # n_heads=4 (head_size=8), n_decoder_blocks=2, batch=2.
    vocab, E, block_size, H, n_blocks = 16, 32, 8, 4, 2
    hs = E // H
    B, T = 2, block_size

    root = jax.random.PRNGKey(0)
    k_params, k_ids = jax.random.split(root)
    params = init_params(k_params, vocab=vocab, E=E, block_size=block_size,
                         H=H, hs=hs, n_blocks=n_blocks)
    x_ids = jax.random.randint(k_ids, (B, T), 0, vocab, dtype=jnp.int32)

    fwd = jax.jit(functools.partial(decoder_trans_forward, n_heads=H))
    logits = jax.block_until_ready(fwd(params, x_ids))
    assert logits.shape == (B, T, vocab), logits.shape
    assert bool(jnp.all(jnp.isfinite(logits)))
    print("KERNEL_OK")
</pallas_src>

<mosaic_0001>
module attributes {stable_mosaic.version = 11 : i64} {
  func.func @_attn_block_kernel(%arg0: i32, %arg1: memref<1x8x32xf32, #tpu.memory_space<vmem>>, %arg2: memref<32x96xbf16, #tpu.memory_space<vmem>>, %arg3: memref<1x32xf32, #tpu.memory_space<vmem>>, %arg4: memref<1x32xf32, #tpu.memory_space<vmem>>, %arg5: memref<1x32xf32, #tpu.memory_space<vmem>>, %arg6: memref<1x32xf32, #tpu.memory_space<vmem>>, %arg7: memref<1x8x32xf32, #tpu.memory_space<vmem>>, %arg8: memref<8x32xf32, #tpu.memory_space<vmem>>) attributes {dimension_semantics = [#tpu.dimension_semantics<parallel>], iteration_bounds = array<i64: 2>, scalar_prefetch = 0 : i64, scratch_operands = 1 : i64, tpu.core_type = #tpu.core_type<tc>, window_params = [{transform_indices = @transform_0, window_bounds = array<i64: 1, 8, 32>}, {pipeline_mode = #tpu.pipeline_mode<synchronous>, transform_indices = @transform_1, window_bounds = array<i64: 32, 96>}, {pipeline_mode = #tpu.pipeline_mode<synchronous>, transform_indices = @transform_2, window_bounds = array<i64: 1, 32>}, {pipeline_mode = #tpu.pipeline_mode<synchronous>, transform_indices = @transform_3, window_bounds = array<i64: 1, 32>}, {pipeline_mode = #tpu.pipeline_mode<synchronous>, transform_indices = @transform_4, window_bounds = array<i64: 1, 32>}, {pipeline_mode = #tpu.pipeline_mode<synchronous>, transform_indices = @transform_5, window_bounds = array<i64: 1, 32>}, {transform_indices = @transform_6, window_bounds = array<i64: 1, 8, 32>}]} {
    %c0 = arith.constant 0 : index
    %c0_0 = arith.constant 0 : index
    %c0_1 = arith.constant 0 : index
    %0 = vector.load %arg1[%c0, %c0_0, %c0_1] : memref<1x8x32xf32, #tpu.memory_space<vmem>>, vector<1x8x32xf32>
    %1 = vector.shape_cast %0 : vector<1x8x32xf32> to vector<8x32xf32>
    %c0_2 = arith.constant 0 : index
    %c0_3 = arith.constant 0 : index
    %2 = vector.load %arg3[%c0_2, %c0_3] : memref<1x32xf32, #tpu.memory_space<vmem>>, vector<1x32xf32>
    %c0_4 = arith.constant 0 : index
    %c0_5 = arith.constant 0 : index
    %3 = vector.load %arg4[%c0_4, %c0_5] : memref<1x32xf32, #tpu.memory_space<vmem>>, vector<1x32xf32>
    %cst = arith.constant dense<0.000000e+00> : vector<8xf32>
    %4 = vector.multi_reduction <add>, %1, %cst [1] : vector<8x32xf32> to vector<8xf32>
    %5 = vector.shape_cast %4 : vector<8xf32> to vector<8x1xf32>
    %cst_6 = arith.constant 3.125000e-02 : f32
    %6 = vector.broadcast %cst_6 : f32 to vector<8x1xf32>
    %7 = arith.mulf %5, %6 : vector<8x1xf32>
    %8 = vector.broadcast %7 : vector<8x1xf32> to vector<8x32xf32>
    %9 = arith.subf %1, %8 : vector<8x32xf32>
    %10 = arith.mulf %9, %9 : vector<8x32xf32>
    %cst_7 = arith.constant dense<0.000000e+00> : vector<8xf32>
    %11 = vector.multi_reduction <add>, %10, %cst_7 [1] : vector<8x32xf32> to vector<8xf32>
    %12 = vector.shape_cast %11 : vector<8xf32> to vector<8x1xf32>
    %cst_8 = arith.constant 3.125000e-02 : f32
    %13 = vector.broadcast %cst_8 : f32 to vector<8x1xf32>
    %14 = arith.mulf %12, %13 : vector<8x1xf32>
    %cst_9 = arith.constant 9.99999974E-6 : f32
    %15 = vector.broadcast %cst_9 : f32 to vector<8x1xf32>
    %16 = arith.addf %14, %15 : vector<8x1xf32>
    %17 = math.rsqrt %16 : vector<8x1xf32>
    %18 = vector.broadcast %17 : vector<8x1xf32> to vector<8x32xf32>
    %19 = arith.mulf %9, %18 : vector<8x32xf32>
    %20 = vector.broadcast %2 : vector<1x32xf32> to vector<8x32xf32>
    %21 = arith.mulf %19, %20 : vector<8x32xf32>
    %22 = vector.broadcast %3 : vector<1x32xf32> to vector<8x32xf32>
    %23 = arith.addf %21, %22 : vector<8x32xf32>
    %24 = arith.truncf %23 : vector<8x32xf32> to vector<8x32xbf16>
    %c0_10 = arith.constant 0 : index
    %c0_11 = arith.constant 0 : index
    %25 = vector.load %arg2[%c0_10, %c0_11] : memref<32x96xbf16, #tpu.memory_space<vmem>>, vector<32x96xbf16>
    %cst_12 = arith.constant dense<0.000000e+00> : vector<8x96xf32>
    %26 = tpu.matmul %24, %25, %cst_12 {dimension_numbers = #tpu.dot_dimension_numbers<[1], [0], [0], [1], [0, 0, 1, 1], [], []>} : vector<8x32xbf16>, vector<32x96xbf16>, vector<8x96xf32> -> vector<8x96xf32>
    %27 = arith.truncf %26 : vector<8x96xf32> to vector<8x96xbf16>
    %28 = tpu.iota {dimensions = array<i32: 0>} : vector<8x8xi32>
    %29 = tpu.iota {dimensions = array<i32: 1>} : vector<8x8xi32>
    %30 = arith.cmpi sle, %29, %28 : vector<8x8xi32>
    %31 = vector.extract_strided_slice %27 {offsets = [0, 0], sizes = [8, 8], strides = [1, 1]} : vector<8x96xbf16> to vector<8x8xbf16>
    %32 = vector.extract_strided_slice %27 {offsets = [0, 32], sizes = [8, 8], strides = [1, 1]} : vector<8x96xbf16> to vector<8x8xbf16>
    %33 = vector.extract_strided_slice %27 {offsets = [0, 64], sizes = [8, 8], strides = [1, 1]} : vector<8x96xbf16> to vector<8x8xbf16>
    %cst_13 = arith.constant dense<0.000000e+00> : vector<8x8xf32>
    %34 = tpu.matmul %31, %32, %cst_13 {dimension_numbers = #tpu.dot_dimension_numbers<[1], [1], [0], [0], [0, 0, 1, 0], [], []>} : vector<8x8xbf16>, vector<8x8xbf16>, vector<8x8xf32> -> vector<8x8xf32>
    %cst_14 = arith.constant -1.000000e+30 : f32
    %35 = vector.broadcast %cst_14 : f32 to vector<8x8xf32>
    %36 = arith.select %30, %34, %35 : vector<8x8xi1>, vector<8x8xf32>
    %cst_15 = arith.constant dense<0xFF800000> : vector<8xf32>
    %37 = vector.multi_reduction <maximumf>, %36, %cst_15 [1] : vector<8x8xf32> to vector<8xf32>
    %38 = vector.shape_cast %37 : vector<8xf32> to vector<8x1xf32>
    %39 = vector.broadcast %38 : vector<8x1xf32> to vector<8x8xf32>
    %40 = arith.subf %36, %39 : vector<8x8xf32>
    %41 = math.exp %40 : vector<8x8xf32>
    %cst_16 = arith.constant dense<0.000000e+00> : vector<8xf32>
    %42 = vector.multi_reduction <add>, %41, %cst_16 [1] : vector<8x8xf32> to vector<8xf32>
    %43 = vector.shape_cast %42 : vector<8xf32> to vector<8x1xf32>
    %44 = tpu.reciprocal %43 {approx = true} : vector<8x1xf32> -> vector<8x1xf32>
    %45 = vector.broadcast %44 : vector<8x1xf32> to vector<8x8xf32>
    %46 = arith.mulf %41, %45 : vector<8x8xf32>
    %47 = arith.truncf %46 : vector<8x8xf32> to vector<8x8xbf16>
    %cst_17 = arith.constant dense<0.000000e+00> : vector<8x8xf32>
    %48 = tpu.matmul %47, %33, %cst_17 {dimension_numbers = #tpu.dot_dimension_numbers<[1], [0], [0], [1], [0, 0, 1, 1], [], []>} : vector<8x8xbf16>, vector<8x8xbf16>, vector<8x8xf32> -> vector<8x8xf32>
    %c0_18 = arith.constant 0 : index
    %c0_19 = arith.constant 0 : index
    %49 = vector.load %arg8[%c0_18, %c0_19] : memref<8x32xf32, #tpu.memory_space<vmem>>, vector<8x8xf32>
    tpu.vector_store %arg8[%c0_18, %c0_19], %48 {strides = array<i32>} : memref<8x32xf32, #tpu.memory_space<vmem>>, vector<8x8xf32>,
    %50 = vector.extract_strided_slice %27 {offsets = [0, 8], sizes = [8, 8], strides = [1, 1]} : vector<8x96xbf16> to vector<8x8xbf16>
    %51 = vector.extract_strided_slice %27 {offsets = [0, 40], sizes = [8, 8], strides = [1, 1]} : vector<8x96xbf16> to vector<8x8xbf16>
    %52 = vector.extract_strided_slice %27 {offsets = [0, 72], sizes = [8, 8], strides = [1, 1]} : vector<8x96xbf16> to vector<8x8xbf16>
    %cst_20 = arith.constant dense<0.000000e+00> : vector<8x8xf32>
    %53 = tpu.matmul %50, %51, %cst_20 {dimension_numbers = #tpu.dot_dimension_numbers<[1], [1], [0], [0], [0, 0, 1, 0], [], []>} : vector<8x8xbf16>, vector<8x8xbf16>, vector<8x8xf32> -> vector<8x8xf32>
    %cst_21 = arith.constant -1.000000e+30 : f32
    %54 = vector.broadcast %cst_21 : f32 to vector<8x8xf32>
    %55 = arith.select %30, %53, %54 : vector<8x8xi1>, vector<8x8xf32>
    %cst_22 = arith.constant dense<0xFF800000> : vector<8xf32>
    %56 = vector.multi_reduction <maximumf>, %55, %cst_22 [1] : vector<8x8xf32> to vector<8xf32>
    %57 = vector.shape_cast %56 : vector<8xf32> to vector<8x1xf32>
    %58 = vector.broadcast %57 : vector<8x1xf32> to vector<8x8xf32>
    %59 = arith.subf %55, %58 : vector<8x8xf32>
    %60 = math.exp %59 : vector<8x8xf32>
    %cst_23 = arith.constant dense<0.000000e+00> : vector<8xf32>
    %61 = vector.multi_reduction <add>, %60, %cst_23 [1] : vector<8x8xf32> to vector<8xf32>
    %62 = vector.shape_cast %61 : vector<8xf32> to vector<8x1xf32>
    %63 = tpu.reciprocal %62 {approx = true} : vector<8x1xf32> -> vector<8x1xf32>
    %64 = vector.broadcast %63 : vector<8x1xf32> to vector<8x8xf32>
    %65 = arith.mulf %60, %64 : vector<8x8xf32>
    %66 = arith.truncf %65 : vector<8x8xf32> to vector<8x8xbf16>
    %cst_24 = arith.constant dense<0.000000e+00> : vector<8x8xf32>
    %67 = tpu.matmul %66, %52, %cst_24 {dimension_numbers = #tpu.dot_dimension_numbers<[1], [0], [0], [1], [0, 0, 1, 1], [], []>} : vector<8x8xbf16>, vector<8x8xbf16>, vector<8x8xf32> -> vector<8x8xf32>
    %c0_25 = arith.constant 0 : index
    %c8 = arith.constant 8 : index
    %68 = vector.load %arg8[%c0_25, %c8] : memref<8x32xf32, #tpu.memory_space<vmem>>, vector<8x8xf32>
    tpu.vector_store %arg8[%c0_25, %c8], %67 {strides = array<i32>} : memref<8x32xf32, #tpu.memory_space<vmem>>, vector<8x8xf32>,
    %69 = vector.extract_strided_slice %27 {offsets = [0, 16], sizes = [8, 8], strides = [1, 1]} : vector<8x96xbf16> to vector<8x8xbf16>
    %70 = vector.extract_strided_slice %27 {offsets = [0, 48], sizes = [8, 8], strides = [1, 1]} : vector<8x96xbf16> to vector<8x8xbf16>
    %71 = vector.extract_strided_slice %27 {offsets = [0, 80], sizes = [8, 8], strides = [1, 1]} : vector<8x96xbf16> to vector<8x8xbf16>
    %cst_26 = arith.constant dense<0.000000e+00> : vector<8x8xf32>
    %72 = tpu.matmul %69, %70, %cst_26 {dimension_numbers = #tpu.dot_dimension_numbers<[1], [1], [0], [0], [0, 0, 1, 0], [], []>} : vector<8x8xbf16>, vector<8x8xbf16>, vector<8x8xf32> -> vector<8x8xf32>
    %cst_27 = arith.constant -1.000000e+30 : f32
    %73 = vector.broadcast %cst_27 : f32 to vector<8x8xf32>
    %74 = arith.select %30, %72, %73 : vector<8x8xi1>, vector<8x8xf32>
    %cst_28 = arith.constant dense<0xFF800000> : vector<8xf32>
    %75 = vector.multi_reduction <maximumf>, %74, %cst_28 [1] : vector<8x8xf32> to vector<8xf32>
    %76 = vector.shape_cast %75 : vector<8xf32> to vector<8x1xf32>
    %77 = vector.broadcast %76 : vector<8x1xf32> to vector<8x8xf32>
    %78 = arith.subf %74, %77 : vector<8x8xf32>
    %79 = math.exp %78 : vector<8x8xf32>
    %cst_29 = arith.constant dense<0.000000e+00> : vector<8xf32>
    %80 = vector.multi_reduction <add>, %79, %cst_29 [1] : vector<8x8xf32> to vector<8xf32>
    %81 = vector.shape_cast %80 : vector<8xf32> to vector<8x1xf32>
    %82 = tpu.reciprocal %81 {approx = true} : vector<8x1xf32> -> vector<8x1xf32>
    %83 = vector.broadcast %82 : vector<8x1xf32> to vector<8x8xf32>
    %84 = arith.mulf %79, %83 : vector<8x8xf32>
    %85 = arith.truncf %84 : vector<8x8xf32> to vector<8x8xbf16>
    %cst_30 = arith.constant dense<0.000000e+00> : vector<8x8xf32>
    %86 = tpu.matmul %85, %71, %cst_30 {dimension_numbers = #tpu.dot_dimension_numbers<[1], [0], [0], [1], [0, 0, 1, 1], [], []>} : vector<8x8xbf16>, vector<8x8xbf16>, vector<8x8xf32> -> vector<8x8xf32>
    %c0_31 = arith.constant 0 : index
    %c16 = arith.constant 16 : index
    %87 = vector.load %arg8[%c0_31, %c16] : memref<8x32xf32, #tpu.memory_space<vmem>>, vector<8x8xf32>
    tpu.vector_store %arg8[%c0_31, %c16], %86 {strides = array<i32>} : memref<8x32xf32, #tpu.memory_space<vmem>>, vector<8x8xf32>,
    %88 = vector.extract_strided_slice %27 {offsets = [0, 24], sizes = [8, 8], strides = [1, 1]} : vector<8x96xbf16> to vector<8x8xbf16>
    %89 = vector.extract_strided_slice %27 {offsets = [0, 56], sizes = [8, 8], strides = [1, 1]} : vector<8x96xbf16> to vector<8x8xbf16>
    %90 = vector.extract_strided_slice %27 {offsets = [0, 88], sizes = [8, 8], strides = [1, 1]} : vector<8x96xbf16> to vector<8x8xbf16>
    %cst_32 = arith.constant dense<0.000000e+00> : vector<8x8xf32>
    %91 = tpu.matmul %88, %89, %cst_32 {dimension_numbers = #tpu.dot_dimension_numbers<[1], [1], [0], [0], [0, 0, 1, 0], [], []>} : vector<8x8xbf16>, vector<8x8xbf16>, vector<8x8xf32> -> vector<8x8xf32>
    %cst_33 = arith.constant -1.000000e+30 : f32
    %92 = vector.broadcast %cst_33 : f32 to vector<8x8xf32>
    %93 = arith.select %30, %91, %92 : vector<8x8xi1>, vector<8x8xf32>
    %cst_34 = arith.constant dense<0xFF800000> : vector<8xf32>
    %94 = vector.multi_reduction <maximumf>, %93, %cst_34 [1] : vector<8x8xf32> to vector<8xf32>
    %95 = vector.shape_cast %94 : vector<8xf32> to vector<8x1xf32>
    %96 = vector.broadcast %95 : vector<8x1xf32> to vector<8x8xf32>
    %97 = arith.subf %93, %96 : vector<8x8xf32>
    %98 = math.exp %97 : vector<8x8xf32>
    %cst_35 = arith.constant dense<0.000000e+00> : vector<8xf32>
    %99 = vector.multi_reduction <add>, %98, %cst_35 [1] : vector<8x8xf32> to vector<8xf32>
    %100 = vector.shape_cast %99 : vector<8xf32> to vector<8x1xf32>
    %101 = tpu.reciprocal %100 {approx = true} : vector<8x1xf32> -> vector<8x1xf32>
    %102 = vector.broadcast %101 : vector<8x1xf32> to vector<8x8xf32>
    %103 = arith.mulf %98, %102 : vector<8x8xf32>
    %104 = arith.truncf %103 : vector<8x8xf32> to vector<8x8xbf16>
    %cst_36 = arith.constant dense<0.000000e+00> : vector<8x8xf32>
    %105 = tpu.matmul %104, %90, %cst_36 {dimension_numbers = #tpu.dot_dimension_numbers<[1], [0], [0], [1], [0, 0, 1, 1], [], []>} : vector<8x8xbf16>, vector<8x8xbf16>, vector<8x8xf32> -> vector<8x8xf32>
    %c0_37 = arith.constant 0 : index
    %c24 = arith.constant 24 : index
    %106 = vector.load %arg8[%c0_37, %c24] : memref<8x32xf32, #tpu.memory_space<vmem>>, vector<8x8xf32>
    tpu.vector_store %arg8[%c0_37, %c24], %105 {strides = array<i32>} : memref<8x32xf32, #tpu.memory_space<vmem>>, vector<8x8xf32>,
    %c0_38 = arith.constant 0 : index
    %c0_39 = arith.constant 0 : index
    %107 = vector.load %arg8[%c0_38, %c0_39] : memref<8x32xf32, #tpu.memory_space<vmem>>, vector<8x32xf32>
    %108 = arith.addf %23, %107 : vector<8x32xf32>
    %c0_40 = arith.constant 0 : index
    %c0_41 = arith.constant 0 : index
    %109 = vector.load %arg5[%c0_40, %c0_41] : memref<1x32xf32, #tpu.memory_space<vmem>>, vector<1x32xf32>
    %c0_42 = arith.constant 0 : index
    %c0_43 = arith.constant 0 : index
    %110 = vector.load %arg6[%c0_42, %c0_43] : memref<1x32xf32, #tpu.memory_space<vmem>>, vector<1x32xf32>
    %cst_44 = arith.constant dense<0.000000e+00> : vector<8xf32>
    %111 = vector.multi_reduction <add>, %108, %cst_44 [1] : vector<8x32xf32> to vector<8xf32>
    %112 = vector.shape_cast %111 : vector<8xf32> to vector<8x1xf32>
    %cst_45 = arith.constant 3.125000e-02 : f32
    %113 = vector.broadcast %cst_45 : f32 to vector<8x1xf32>
    %114 = arith.mulf %112, %113 : vector<8x1xf32>
    %115 = vector.broadcast %114 : vector<8x1xf32> to vector<8x32xf32>
    %116 = arith.subf %108, %115 : vector<8x32xf32>
    %117 = arith.mulf %116, %116 : vector<8x32xf32>
    %cst_46 = arith.constant dense<0.000000e+00> : vector<8xf32>
    %118 = vector.multi_reduction <add>, %117, %cst_46 [1] : vector<8x32xf32> to vector<8xf32>
    %119 = vector.shape_cast %118 : vector<8xf32> to vector<8x1xf32>
    %cst_47 = arith.constant 3.125000e-02 : f32
    %120 = vector.broadcast %cst_47 : f32 to vector<8x1xf32>
    %121 = arith.mulf %119, %120 : vector<8x1xf32>
    %cst_48 = arith.constant 9.99999974E-6 : f32
    %122 = vector.broadcast %cst_48 : f32 to vector<8x1xf32>
    %123 = arith.addf %121, %122 : vector<8x1xf32>
    %124 = math.rsqrt %123 : vector<8x1xf32>
    %125 = vector.broadcast %124 : vector<8x1xf32> to vector<8x32xf32>
    %126 = arith.mulf %116, %125 : vector<8x32xf32>
    %127 = vector.broadcast %109 : vector<1x32xf32> to vector<8x32xf32>
    %128 = arith.mulf %126, %127 : vector<8x32xf32>
    %129 = vector.broadcast %110 : vector<1x32xf32> to vector<8x32xf32>
    %130 = arith.addf %128, %129 : vector<8x32xf32>
    %131 = arith.addf %1, %130 : vector<8x32xf32>
    %c0_49 = arith.constant 0 : index
    %c0_50 = arith.constant 0 : index
    %c0_51 = arith.constant 0 : index
    %132 = vector.load %arg7[%c0_49, %c0_50, %c0_51] : memref<1x8x32xf32, #tpu.memory_space<vmem>>, vector<1x8x32xf32>
    %133 = vector.shape_cast %132 : vector<1x8x32xf32> to vector<8x32xf32>
    %134 = vector.shape_cast %131 : vector<8x32xf32> to vector<1x8x32xf32>
    tpu.vector_store %arg7[%c0_49, %c0_50, %c0_51], %134 {strides = array<i32>} : memref<1x8x32xf32, #tpu.memory_space<vmem>>, vector<1x8x32xf32>,
    return
  }
  func.func @transform_0(%arg0: i32) -> (i32, i32, i32) {
    %c0_i32 = arith.constant 0 : i32
    %c0_i32_0 = arith.constant 0 : i32
    %c0_i32_1 = arith.constant 0 : i32
    return %arg0, %c0_i32, %c0_i32_0 : i32, i32, i32
  }
  func.func @transform_1(%arg0: i32) -> (i32, i32) {
    %c0_i32 = arith.constant 0 : i32
    %c0_i32_0 = arith.constant 0 : i32
    %c0_i32_1 = arith.constant 0 : i32
    return %c0_i32, %c0_i32_0 : i32, i32
  }
  func.func @transform_2(%arg0: i32) -> (i32, i32) {
    %c0_i32 = arith.constant 0 : i32
    %c0_i32_0 = arith.constant 0 : i32
    %c0_i32_1 = arith.constant 0 : i32
    return %c0_i32, %c0_i32_0 : i32, i32
  }
  func.func @transform_3(%arg0: i32) -> (i32, i32) {
    %c0_i32 = arith.constant 0 : i32
    %c0_i32_0 = arith.constant 0 : i32
    %c0_i32_1 = arith.constant 0 : i32
    return %c0_i32, %c0_i32_0 : i32, i32
  }
  func.func @transform_4(%arg0: i32) -> (i32, i32) {
    %c0_i32 = arith.constant 0 : i32
    %c0_i32_0 = arith.constant 0 : i32
    %c0_i32_1 = arith.constant 0 : i32
    return %c0_i32, %c0_i32_0 : i32, i32
  }
  func.func @transform_5(%arg0: i32) -> (i32, i32) {
    %c0_i32 = arith.constant 0 : i32
    %c0_i32_0 = arith.constant 0 : i32
    %c0_i32_1 = arith.constant 0 : i32
    return %c0_i32, %c0_i32_0 : i32, i32
  }
  func.func @transform_6(%arg0: i32) -> (i32, i32, i32) {
    %c0_i32 = arith.constant 0 : i32
    %c0_i32_0 = arith.constant 0 : i32
    %c0_i32_1 = arith.constant 0 : i32
    return %arg0, %c0_i32, %c0_i32_0 : i32, i32, i32
  }
}

module attributes {stable_mosaic.version = 11 : i64} {
  func.func @_ffn_block_kernel(%arg0: i32, %arg1: i32, %arg2: memref<16x32xf32, #tpu.memory_space<vmem>>, %arg3: memref<1x32xf32, #tpu.memory_space<vmem>>, %arg4: memref<1x32xf32, #tpu.memory_space<vmem>>, %arg5: memref<32x128xbf16, #tpu.memory_space<vmem>>, %arg6: memref<1x128xf32, #tpu.memory_space<vmem>>, %arg7: memref<128x32xbf16, #tpu.memory_space<vmem>>, %arg8: memref<1x32xf32, #tpu.memory_space<vmem>>, %arg9: memref<16x32xf32, #tpu.memory_space<vmem>>, %arg10: memref<16x32xbf16, #tpu.memory_space<vmem>>, %arg11: memref<16x32xf32, #tpu.memory_space<vmem>>) attributes {dimension_semantics = [#tpu.dimension_semantics<parallel>, #tpu.dimension_semantics<arbitrary>], iteration_bounds = array<i64: 1, 1>, scalar_prefetch = 0 : i64, scratch_operands = 2 : i64, tpu.core_type = #tpu.core_type<tc>, window_params = [{transform_indices = @transform_0, window_bounds = array<i64: 16, 32>}, {pipeline_mode = #tpu.pipeline_mode<synchronous>, transform_indices = @transform_1, window_bounds = array<i64: 1, 32>}, {pipeline_mode = #tpu.pipeline_mode<synchronous>, transform_indices = @transform_2, window_bounds = array<i64: 1, 32>}, {transform_indices = @transform_3, window_bounds = array<i64: 32, 128>}, {transform_indices = @transform_4, window_bounds = array<i64: 1, 128>}, {transform_indices = @transform_5, window_bounds = array<i64: 128, 32>}, {pipeline_mode = #tpu.pipeline_mode<synchronous>, transform_indices = @transform_6, window_bounds = array<i64: 1, 32>}, {transform_indices = @transform_7, window_bounds = array<i64: 16, 32>}]} {
    %c0_i32 = arith.constant 0 : i32
    %0 = arith.cmpi eq, %arg1, %c0_i32 : i32
    %1 = arith.extui %0 : i1 to i32
    %c0_i32_0 = arith.constant 0 : i32
    %2 = arith.cmpi ne, %1, %c0_i32_0 : i32
    scf.if %2 {
      %c0_16 = arith.constant 0 : index
      %c0_17 = arith.constant 0 : index
      %20 = vector.load %arg2[%c0_16, %c0_17] : memref<16x32xf32, #tpu.memory_space<vmem>>, vector<16x32xf32>
      %c0_18 = arith.constant 0 : index
      %c0_19 = arith.constant 0 : index
      %21 = vector.load %arg3[%c0_18, %c0_19] : memref<1x32xf32, #tpu.memory_space<vmem>>, vector<1x32xf32>
      %c0_20 = arith.constant 0 : index
      %c0_21 = arith.constant 0 : index
      %22 = vector.load %arg4[%c0_20, %c0_21] : memref<1x32xf32, #tpu.memory_space<vmem>>, vector<1x32xf32>
      %cst_22 = arith.constant dense<0.000000e+00> : vector<16xf32>
      %23 = vector.multi_reduction <add>, %20, %cst_22 [1] : vector<16x32xf32> to vector<16xf32>
      %24 = vector.shape_cast %23 : vector<16xf32> to vector<16x1xf32>
      %cst_23 = arith.constant 3.125000e-02 : f32
      %25 = vector.broadcast %cst_23 : f32 to vector<16x1xf32>
      %26 = arith.mulf %24, %25 : vector<16x1xf32>
      %27 = vector.broadcast %26 : vector<16x1xf32> to vector<16x32xf32>
      %28 = arith.subf %20, %27 : vector<16x32xf32>
      %29 = arith.mulf %28, %28 : vector<16x32xf32>
      %cst_24 = arith.constant dense<0.000000e+00> : vector<16xf32>
      %30 = vector.multi_reduction <add>, %29, %cst_24 [1] : vector<16x32xf32> to vector<16xf32>
      %31 = vector.shape_cast %30 : vector<16xf32> to vector<16x1xf32>
      %cst_25 = arith.constant 3.125000e-02 : f32
      %32 = vector.broadcast %cst_25 : f32 to vector<16x1xf32>
      %33 = arith.mulf %31, %32 : vector<16x1xf32>
      %cst_26 = arith.constant 9.99999974E-6 : f32
      %34 = vector.broadcast %cst_26 : f32 to vector<16x1xf32>
      %35 = arith.addf %33, %34 : vector<16x1xf32>
      %36 = math.rsqrt %35 : vector<16x1xf32>
      %37 = vector.broadcast %36 : vector<16x1xf32> to vector<16x32xf32>
      %38 = arith.mulf %28, %37 : vector<16x32xf32>
      %39 = vector.broadcast %21 : vector<1x32xf32> to vector<16x32xf32>
      %40 = arith.mulf %38, %39 : vector<16x32xf32>
      %41 = vector.broadcast %22 : vector<1x32xf32> to vector<16x32xf32>
      %42 = arith.addf %40, %41 : vector<16x32xf32>
      %43 = arith.truncf %42 : vector<16x32xf32> to vector<16x32xbf16>
      %c0_27 = arith.constant 0 : index
      %c0_28 = arith.constant 0 : index
      %44 = vector.load %arg10[%c0_27, %c0_28] : memref<16x32xbf16, #tpu.memory_space<vmem>>, vector<16x32xbf16>
      tpu.vector_store %arg10[%c0_27, %c0_28], %43 {strides = array<i32>} : memref<16x32xbf16, #tpu.memory_space<vmem>>, vector<16x32xbf16>,
      %cst_29 = arith.constant 0.000000e+00 : f32
      %45 = vector.broadcast %cst_29 : f32 to vector<16x32xf32>
      %c0_30 = arith.constant 0 : index
      %c0_31 = arith.constant 0 : index
      %46 = vector.load %arg11[%c0_30, %c0_31] : memref<16x32xf32, #tpu.memory_space<vmem>>, vector<16x32xf32>
      tpu.vector_store %arg11[%c0_30, %c0_31], %45 {strides = array<i32>} : memref<16x32xf32, #tpu.memory_space<vmem>>, vector<16x32xf32>,
    } else {
    }
    %c0 = arith.constant 0 : index
    %c0_1 = arith.constant 0 : index
    %3 = vector.load %arg10[%c0, %c0_1] : memref<16x32xbf16, #tpu.memory_space<vmem>>, vector<16x32xbf16>
    %c0_2 = arith.constant 0 : index
    %c0_3 = arith.constant 0 : index
    %4 = vector.load %arg5[%c0_2, %c0_3] : memref<32x128xbf16, #tpu.memory_space<vmem>>, vector<32x128xbf16>
    %cst = arith.constant dense<0.000000e+00> : vector<16x128xf32>
    %5 = tpu.matmul %3, %4, %cst {dimension_numbers = #tpu.dot_dimension_numbers<[1], [0], [0], [1], [0, 0, 1, 1], [], []>} : vector<16x32xbf16>, vector<32x128xbf16>, vector<16x128xf32> -> vector<16x128xf32>
    %c0_4 = arith.constant 0 : index
    %c0_5 = arith.constant 0 : index
    %6 = vector.load %arg6[%c0_4, %c0_5] : memref<1x128xf32, #tpu.memory_space<vmem>>, vector<1x128xf32>
    %7 = vector.broadcast %6 : vector<1x128xf32> to vector<16x128xf32>
    %8 = arith.addf %5, %7 : vector<16x128xf32>
    %cst_6 = arith.constant 0.000000e+00 : f32
    %9 = vector.broadcast %cst_6 : f32 to vector<16x128xf32>
    %10 = arith.maximumf %8, %9 : vector<16x128xf32>
    %c0_7 = arith.constant 0 : index
    %c0_8 = arith.constant 0 : index
    %11 = vector.load %arg11[%c0_7, %c0_8] : memref<16x32xf32, #tpu.memory_space<vmem>>, vector<16x32xf32>
    %12 = arith.truncf %10 : vector<16x128xf32> to vector<16x128xbf16>
    %c0_9 = arith.constant 0 : index
    %c0_10 = arith.constant 0 : index
    %13 = vector.load %arg7[%c0_9, %c0_10] : memref<128x32xbf16, #tpu.memory_space<vmem>>, vector<128x32xbf16>
    %cst_11 = arith.constant dense<0.000000e+00> : vector<16x32xf32>
    %14 = tpu.matmul %12, %13, %cst_11 {dimension_numbers = #tpu.dot_dimension_numbers<[1], [0], [0], [1], [0, 0, 1, 1], [], []>} : vector<16x128xbf16>, vector<128x32xbf16>, vector<16x32xf32> -> vector<16x32xf32>
    %15 = arith.addf %11, %14 : vector<16x32xf32>
    %c0_12 = arith.constant 0 : index
    %c0_13 = arith.constant 0 : index
    %16 = vector.load %arg11[%c0_12, %c0_13] : memref<16x32xf32, #tpu.memory_space<vmem>>, vector<16x32xf32>
    tpu.vector_store %arg11[%c0_12, %c0_13], %15 {strides = array<i32>} : memref<16x32xf32, #tpu.memory_space<vmem>>, vector<16x32xf32>,
    %c0_i32_14 = arith.constant 0 : i32
    %17 = arith.cmpi eq, %arg1, %c0_i32_14 : i32
    %18 = arith.extui %17 : i1 to i32
    %c0_i32_15 = arith.constant 0 : i32
    %19 = arith.cmpi ne, %18, %c0_i32_15 : i32
    scf.if %19 {
      %c0_16 = arith.constant 0 : index
      %c0_17 = arith.constant 0 : index
      %20 = vector.load %arg2[%c0_16, %c0_17] : memref<16x32xf32, #tpu.memory_space<vmem>>, vector<16x32xf32>
      %c0_18 = arith.constant 0 : index
      %c0_19 = arith.constant 0 : index
      %21 = vector.load %arg11[%c0_18, %c0_19] : memref<16x32xf32, #tpu.memory_space<vmem>>, vector<16x32xf32>
      %22 = arith.addf %20, %21 : vector<16x32xf32>
      %c0_20 = arith.constant 0 : index
      %c0_21 = arith.constant 0 : index
      %23 = vector.load %arg8[%c0_20, %c0_21] : memref<1x32xf32, #tpu.memory_space<vmem>>, vector<1x32xf32>
      %24 = vector.broadcast %23 : vector<1x32xf32> to vector<16x32xf32>
      %25 = arith.addf %22, %24 : vector<16x32xf32>
      %c0_22 = arith.constant 0 : index
      %c0_23 = arith.constant 0 : index
      %26 = vector.load %arg9[%c0_22, %c0_23] : memref<16x32xf32, #tpu.memory_space<vmem>>, vector<16x32xf32>
      tpu.vector_store %arg9[%c0_22, %c0_23], %25 {strides = array<i32>} : memref<16x32xf32, #tpu.memory_space<vmem>>, vector<16x32xf32>,
    } else {
    }
    return
  }
  func.func @transform_0(%arg0: i32, %arg1: i32) -> (i32, i32) {
    %c0_i32 = arith.constant 0 : i32
    %c0_i32_0 = arith.constant 0 : i32
    return %arg0, %c0_i32 : i32, i32
  }
  func.func @transform_1(%arg0: i32, %arg1: i32) -> (i32, i32) {
    %c0_i32 = arith.constant 0 : i32
    %c0_i32_0 = arith.constant 0 : i32
    %c0_i32_1 = arith.constant 0 : i32
    return %c0_i32, %c0_i32_0 : i32, i32
  }
  func.func @transform_2(%arg0: i32, %arg1: i32) -> (i32, i32) {
    %c0_i32 = arith.constant 0 : i32
    %c0_i32_0 = arith.constant 0 : i32
    %c0_i32_1 = arith.constant 0 : i32
    return %c0_i32, %c0_i32_0 : i32, i32
  }
  func.func @transform_3(%arg0: i32, %arg1: i32) -> (i32, i32) {
    %c0_i32 = arith.constant 0 : i32
    %c0_i32_0 = arith.constant 0 : i32
    return %c0_i32, %arg1 : i32, i32
  }
  func.func @transform_4(%arg0: i32, %arg1: i32) -> (i32, i32) {
    %c0_i32 = arith.constant 0 : i32
    %c0_i32_0 = arith.constant 0 : i32
    return %c0_i32, %arg1 : i32, i32
  }
  func.func @transform_5(%arg0: i32, %arg1: i32) -> (i32, i32) {
    %c0_i32 = arith.constant 0 : i32
    %c0_i32_0 = arith.constant 0 : i32
    return %arg1, %c0_i32 : i32, i32
  }
  func.func @transform_6(%arg0: i32, %arg1: i32) -> (i32, i32) {
    %c0_i32 = arith.constant 0 : i32
    %c0_i32_0 = arith.constant 0 : i32
    %c0_i32_1 = arith.constant 0 : i32
    return %c0_i32, %c0_i32_0 : i32, i32
  }
  func.func @transform_7(%arg0: i32, %arg1: i32) -> (i32, i32) {
    %c0_i32 = arith.constant 0 : i32
    %c0_i32_0 = arith.constant 0 : i32
    return %arg0, %c0_i32 : i32, i32
  }
}

module attributes {stable_mosaic.version = 11 : i64} {
  func.func @_lm_head_kernel(%arg0: i32, %arg1: i32, %arg2: memref<16x32xf32, #tpu.memory_space<vmem>>, %arg3: memref<1x32xf32, #tpu.memory_space<vmem>>, %arg4: memref<1x32xf32, #tpu.memory_space<vmem>>, %arg5: memref<32x16xbf16, #tpu.memory_space<vmem>>, %arg6: memref<1x16xf32, #tpu.memory_space<vmem>>, %arg7: memref<16x16xf32, #tpu.memory_space<vmem>>, %arg8: memref<16x32xbf16, #tpu.memory_space<vmem>>) attributes {dimension_semantics = [#tpu.dimension_semantics<parallel>, #tpu.dimension_semantics<arbitrary>], iteration_bounds = array<i64: 1, 1>, scalar_prefetch = 0 : i64, scratch_operands = 1 : i64, tpu.core_type = #tpu.core_type<tc>, window_params = [{transform_indices = @transform_0, window_bounds = array<i64: 16, 32>}, {pipeline_mode = #tpu.pipeline_mode<synchronous>, transform_indices = @transform_1, window_bounds = array<i64: 1, 32>}, {pipeline_mode = #tpu.pipeline_mode<synchronous>, transform_indices = @transform_2, window_bounds = array<i64: 1, 32>}, {transform_indices = @transform_3, window_bounds = array<i64: 32, 16>}, {transform_indices = @transform_4, window_bounds = array<i64: 1, 16>}, {transform_indices = @transform_5, window_bounds = array<i64: 16, 16>}]} {
    %c0_i32 = arith.constant 0 : i32
    %0 = arith.cmpi eq, %arg1, %c0_i32 : i32
    %1 = arith.extui %0 : i1 to i32
    %c0_i32_0 = arith.constant 0 : i32
    %2 = arith.cmpi ne, %1, %c0_i32_0 : i32
    scf.if %2 {
      %c0_8 = arith.constant 0 : index
      %c0_9 = arith.constant 0 : index
      %10 = vector.load %arg2[%c0_8, %c0_9] : memref<16x32xf32, #tpu.memory_space<vmem>>, vector<16x32xf32>
      %c0_10 = arith.constant 0 : index
      %c0_11 = arith.constant 0 : index
      %11 = vector.load %arg3[%c0_10, %c0_11] : memref<1x32xf32, #tpu.memory_space<vmem>>, vector<1x32xf32>
      %c0_12 = arith.constant 0 : index
      %c0_13 = arith.constant 0 : index
      %12 = vector.load %arg4[%c0_12, %c0_13] : memref<1x32xf32, #tpu.memory_space<vmem>>, vector<1x32xf32>
      %cst_14 = arith.constant dense<0.000000e+00> : vector<16xf32>
      %13 = vector.multi_reduction <add>, %10, %cst_14 [1] : vector<16x32xf32> to vector<16xf32>
      %14 = vector.shape_cast %13 : vector<16xf32> to vector<16x1xf32>
      %cst_15 = arith.constant 3.125000e-02 : f32
      %15 = vector.broadcast %cst_15 : f32 to vector<16x1xf32>
      %16 = arith.mulf %14, %15 : vector<16x1xf32>
      %17 = vector.broadcast %16 : vector<16x1xf32> to vector<16x32xf32>
      %18 = arith.subf %10, %17 : vector<16x32xf32>
      %19 = arith.mulf %18, %18 : vector<16x32xf32>
      %cst_16 = arith.constant dense<0.000000e+00> : vector<16xf32>
      %20 = vector.multi_reduction <add>, %19, %cst_16 [1] : vector<16x32xf32> to vector<16xf32>
      %21 = vector.shape_cast %20 : vector<16xf32> to vector<16x1xf32>
      %cst_17 = arith.constant 3.125000e-02 : f32
      %22 = vector.broadcast %cst_17 : f32 to vector<16x1xf32>
      %23 = arith.mulf %21, %22 : vector<16x1xf32>
      %cst_18 = arith.constant 9.99999974E-6 : f32
      %24 = vector.broadcast %cst_18 : f32 to vector<16x1xf32>
      %25 = arith.addf %23, %24 : vector<16x1xf32>
      %26 = math.rsqrt %25 : vector<16x1xf32>
      %27 = vector.broadcast %26 : vector<16x1xf32> to vector<16x32xf32>
      %28 = arith.mulf %18, %27 : vector<16x32xf32>
      %29 = vector.broadcast %11 : vector<1x32xf32> to vector<16x32xf32>
      %30 = arith.mulf %28, %29 : vector<16x32xf32>
      %31 = vector.broadcast %12 : vector<1x32xf32> to vector<16x32xf32>
      %32 = arith.addf %30, %31 : vector<16x32xf32>
      %33 = arith.truncf %32 : vector<16x32xf32> to vector<16x32xbf16>
      %c0_19 = arith.constant 0 : index
      %c0_20 = arith.constant 0 : index
      %34 = vector.load %arg8[%c0_19, %c0_20] : memref<16x32xbf16, #tpu.memory_space<vmem>>, vector<16x32xbf16>
      tpu.vector_store %arg8[%c0_19, %c0_20], %33 {strides = array<i32>} : memref<16x32xbf16, #tpu.memory_space<vmem>>, vector<16x32xbf16>,
    } else {
    }
    %c0 = arith.constant 0 : index
    %c0_1 = arith.constant 0 : index
    %3 = vector.load %arg8[%c0, %c0_1] : memref<16x32xbf16, #tpu.memory_space<vmem>>, vector<16x32xbf16>
    %c0_2 = arith.constant 0 : index
    %c0_3 = arith.constant 0 : index
    %4 = vector.load %arg5[%c0_2, %c0_3] : memref<32x16xbf16, #tpu.memory_space<vmem>>, vector<32x16xbf16>
    %cst = arith.constant dense<0.000000e+00> : vector<16x16xf32>
    %5 = tpu.matmul %3, %4, %cst {dimension_numbers = #tpu.dot_dimension_numbers<[1], [0], [0], [1], [0, 0, 1, 1], [], []>} : vector<16x32xbf16>, vector<32x16xbf16>, vector<16x16xf32> -> vector<16x16xf32>
    %c0_4 = arith.constant 0 : index
    %c0_5 = arith.constant 0 : index
    %6 = vector.load %arg6[%c0_4, %c0_5] : memref<1x16xf32, #tpu.memory_space<vmem>>, vector<1x16xf32>
    %7 = vector.broadcast %6 : vector<1x16xf32> to vector<16x16xf32>
    %8 = arith.addf %5, %7 : vector<16x16xf32>
    %c0_6 = arith.constant 0 : index
    %c0_7 = arith.constant 0 : index
    %9 = vector.load %arg7[%c0_6, %c0_7] : memref<16x16xf32, #tpu.memory_space<vmem>>, vector<16x16xf32>
    tpu.vector_store %arg7[%c0_6, %c0_7], %8 {strides = array<i32>} : memref<16x16xf32, #tpu.memory_space<vmem>>, vector<16x16xf32>,
    return
  }
  func.func @transform_0(%arg0: i32, %arg1: i32) -> (i32, i32) {
    %c0_i32 = arith.constant 0 : i32
    %c0_i32_0 = arith.constant 0 : i32
    return %arg0, %c0_i32 : i32, i32
  }
  func.func @transform_1(%arg0: i32, %arg1: i32) -> (i32, i32) {
    %c0_i32 = arith.constant 0 : i32
    %c0_i32_0 = arith.constant 0 : i32
    %c0_i32_1 = arith.constant 0 : i32
    return %c0_i32, %c0_i32_0 : i32, i32
  }
  func.func @transform_2(%arg0: i32, %arg1: i32) -> (i32, i32) {
    %c0_i32 = arith.constant 0 : i32
    %c0_i32_0 = arith.constant 0 : i32
    %c0_i32_1 = arith.constant 0 : i32
    return %c0_i32, %c0_i32_0 : i32, i32
  }
  func.func @transform_3(%arg0: i32, %arg1: i32) -> (i32, i32) {
    %c0_i32 = arith.constant 0 : i32
    %c0_i32_0 = arith.constant 0 : i32
    return %c0_i32, %arg1 : i32, i32
  }
  func.func @transform_4(%arg0: i32, %arg1: i32) -> (i32, i32) {
    %c0_i32 = arith.constant 0 : i32
    %c0_i32_0 = arith.constant 0 : i32
    return %c0_i32, %arg1 : i32, i32
  }
  func.func @transform_5(%arg0: i32, %arg1: i32) -> (i32, i32) {
    %c0_i32 = arith.constant 0 : i32
    return %arg0, %arg1 : i32, i32
  }
}

</mosaic_0001>

<llo_original>
// kernel: decoder_trans_forward.5
$region0: #{decoder_trans_forward.5}
  #allocation0 [shape = 'u32[]', space=smem, size = 0x4, offset = 0x4, fixed_abs, tag = 'smem constant byte address 0x4 - core index']
  #allocation1 [shape = 'u32[72,128]{1,0:T(1,128)}', space=vmem, size = 0x9000, scoped, tag = 'internal scratch']
  #allocation2 [shape = 'f32[8,32]{1,0:T(8,128)}', space=vmem, size = 0x1000, scoped, tag = 'scratch operand']
  %s0 = inlined_call_operand.vmem [shape: f32[2,8,32], index: 0, kind: input, shape index: {}]
  %s1 = inlined_call_operand.vmem [shape: bf16[32,96], index: 1, kind: input, shape index: {}]
  %s2 = inlined_call_operand.vmem [shape: f32[1,32], index: 2, kind: input, shape index: {}]
  %s3 = inlined_call_operand.vmem [shape: f32[1,32], index: 3, kind: input, shape index: {}]
  %s4 = inlined_call_operand.vmem [shape: f32[1,32], index: 4, kind: input, shape index: {}]
  %s5 = inlined_call_operand.vmem [shape: f32[1,32], index: 5, kind: input, shape index: {}]
  %s6 = inlined_call_operand.vmem [shape: f32[2,8,32], index: 6, kind: output, shape index: {}]
  %s7 = sld [smem:[#allocation0]]
  $region57: #{decoder_trans_forward.5} parent=0
    _
  %s9 = ssub.s32 1, %s7
  %s10 = scalar_select 0, %s9, %s7
  loop: start=0, step=1, limit=4
  $region2: #{decoder_trans_forward.5} parent=0 // loop_pre_header
    _
  $region3: #{decoder_trans_forward.5} parent=0 // loop_header
    %s12 = sphi 0, %s16
    %p13 = scmp.ge.s32.totalorder %s12, 4
    %s22 = sphi 0, %s24
    %s25 = sphi 0, %s22
    %s26 = sphi 0, %s25
    %s42 = sphi 0, %s26
    %s46 = sphi 0, %s46
    %s48 = sphi 0, %s46
    %s49 = sphi 0, %s48
    %s63 = sphi 0, %s49
    %s67 = sphi 0, %s67
    %s69 = sphi 0, %s67
    %s70 = sphi 0, %s69
    %s84 = sphi 0, %s70
    %s88 = sphi 0, %s88
    %s90 = sphi 0, %s88
    %s91 = sphi 0, %s90
    %s105 = sphi 0, %s91
    %s109 = sphi 0, %s109
    %s111 = sphi 0, %s109
    %s112 = sphi 0, %s111
    %s126 = sphi 0, %s112
    %s130 = sphi 0, %s130
    %s132 = sphi 0, %s130
    %s133 = sphi 0, %s132
    %s147 = sphi 0, %s133
    %s153 = sphi 0, %s155
    %s156 = sphi 0, %s153
    %s157 = sphi 0, %s156
    %s173 = sphi 0, %s157
  $region4: #{decoder_trans_forward.5} parent=0 // loop_header_branch
    %15 = sbr.rel (%p13) target = $region8
  $region5: #{decoder_trans_forward.5} parent=0 // loop_body
    %s17 = ssub.s32 %s12, 1
    %s18 = ssub.s32 %s12, 2
    %s19 = sadd.s32 %s12, 1
    %s20 = ssub.s32 %s12, %s19
    %p21 = scmp.eq.s32.totalorder %s20, 0
    %s23 = sadd.s32 %s22, 1
    %s24 = scalar_select %p21, %s22, %s23
    %p27 = pneg %p21
    %p28 = scmp.eq.s32.totalorder %s12, 1
    %p29 = por %p27, %p28
    %p30 = scmp.ne.s32.totalorder %s22, %s25
    %p31 = scmp.eq.s32.totalorder %s12, 0
    %p32 = por %p30, %p31
    %p33 = scmp.ne.s32.totalorder %s22, %s25
    %p34 = scmp.eq.s32.totalorder %s17, 1
    %p35 = por %p33, %p34
    %p36 = scmp.ne.s32.totalorder %s25, %s26
    %p37 = scmp.eq.s32.totalorder %s17, 0
    %p38 = por %p36, %p37
    %p39 = scmp.ne.s32.totalorder %s25, %s26
    %p40 = scmp.eq.s32.totalorder %s18, 1
    %p41 = por %p39, %p40
    %p43 = scmp.ne.s32.totalorder %s26, %s42
    %p44 = scmp.eq.s32.totalorder %s18, 0
    %p45 = por %p43, %p44
    %s47 = sadd.s32 %s46, 1
    %p50 = scmp.eq.s32.totalorder %s12, 1
    %p51 = scmp.ne.s32.totalorder %s46, %s48
    %p52 = scmp.eq.s32.totalorder %s12, 0
    %p53 = por %p51, %p52
    %p54 = scmp.ne.s32.totalorder %s46, %s48
    %p55 = scmp.eq.s32.totalorder %s17, 1
    %p56 = por %p54, %p55
    %p57 = scmp.ne.s32.totalorder %s48, %s49
    %p58 = scmp.eq.s32.totalorder %s17, 0
    %p59 = por %p57, %p58
    %p60 = scmp.ne.s32.totalorder %s48, %s49
    %p61 = scmp.eq.s32.totalorder %s18, 1
    %p62 = por %p60, %p61
    %p64 = scmp.ne.s32.totalorder %s49, %s63
    %p65 = scmp.eq.s32.totalorder %s18, 0
    %p66 = por %p64, %p65
    %s68 = sadd.s32 %s67, 1
    %p71 = scmp.eq.s32.totalorder %s12, 1
    %p72 = scmp.ne.s32.totalorder %s67, %s69
    %p73 = scmp.eq.s32.totalorder %s12, 0
    %p74 = por %p72, %p73
    %p75 = scmp.ne.s32.totalorder %s67, %s69
    %p76 = scmp.eq.s32.totalorder %s17, 1
    %p77 = por %p75, %p76
    %p78 = scmp.ne.s32.totalorder %s69, %s70
    %p79 = scmp.eq.s32.totalorder %s17, 0
    %p80 = por %p78, %p79
    %p81 = scmp.ne.s32.totalorder %s69, %s70
    %p82 = scmp.eq.s32.totalorder %s18, 1
    %p83 = por %p81, %p82
    %p85 = scmp.ne.s32.totalorder %s70, %s84
    %p86 = scmp.eq.s32.totalorder %s18, 0
    %p87 = por %p85, %p86
    %s89 = sadd.s32 %s88, 1
    %p92 = scmp.eq.s32.totalorder %s12, 1
    %p93 = scmp.ne.s32.totalorder %s88, %s90
    %p94 = scmp.eq.s32.totalorder %s12, 0
    %p95 = por %p93, %p94
    %p96 = scmp.ne.s32.totalorder %s88, %s90
    %p97 = scmp.eq.s32.totalorder %s17, 1
    %p98 = por %p96, %p97
    %p99 = scmp.ne.s32.totalorder %s90, %s91
    %p100 = scmp.eq.s32.totalorder %s17, 0
    %p101 = por %p99, %p100
    %p102 = scmp.ne.s32.totalorder %s90, %s91
    %p103 = scmp.eq.s32.totalorder %s18, 1
    %p104 = por %p102, %p103
    %p106 = scmp.ne.s32.totalorder %s91, %s105
    %p107 = scmp.eq.s32.totalorder %s18, 0
    %p108 = por %p106, %p107
    %s110 = sadd.s32 %s109, 1
    %p113 = scmp.eq.s32.totalorder %s12, 1
    %p114 = scmp.ne.s32.totalorder %s109, %s111
    %p115 = scmp.eq.s32.totalorder %s12, 0
    %p116 = por %p114, %p115
    %p117 = scmp.ne.s32.totalorder %s109, %s111
    %p118 = scmp.eq.s32.totalorder %s17, 1
    %p119 = por %p117, %p118
    %p120 = scmp.ne.s32.totalorder %s111, %s112
    %p121 = scmp.eq.s32.totalorder %s17, 0
    %p122 = por %p120, %p121
    %p123 = scmp.ne.s32.totalorder %s111, %s112
    %p124 = scmp.eq.s32.totalorder %s18, 1
    %p125 = por %p123, %p124
    %p127 = scmp.ne.s32.totalorder %s112, %s126
    %p128 = scmp.eq.s32.totalorder %s18, 0
    %p129 = por %p127, %p128
    %s131 = sadd.s32 %s130, 1
    %p134 = scmp.eq.s32.totalorder %s12, 1
    %p135 = scmp.ne.s32.totalorder %s130, %s132
    %p136 = scmp.eq.s32.totalorder %s12, 0
    %p137 = por %p135, %p136
    %p138 = scmp.ne.s32.totalorder %s130, %s132
    %p139 = scmp.eq.s32.totalorder %s17, 1
    %p140 = por %p138, %p139
    %p141 = scmp.ne.s32.totalorder %s132, %s133
    %p142 = scmp.eq.s32.totalorder %s17, 0
    %p143 = por %p141, %p142
    %p144 = scmp.ne.s32.totalorder %s132, %s133
    %p145 = scmp.eq.s32.totalorder %s18, 1
    %p146 = por %p144, %p145
    %p148 = scmp.ne.s32.totalorder %s133, %s147
    %p149 = scmp.eq.s32.totalorder %s18, 0
    %p150 = por %p148, %p149
    %s151 = ssub.s32 %s12, %s19
    %p152 = scmp.eq.s32.totalorder %s151, 0
    %s154 = sadd.s32 %s153, 1
    %s155 = scalar_select %p152, %s153, %s154
    %p158 = pneg %p152
    %p159 = scmp.eq.s32.totalorder %s12, 1
    %p160 = por %p158, %p159
    %p161 = scmp.ne.s32.totalorder %s153, %s156
    %p162 = scmp.eq.s32.totalorder %s12, 0
    %p163 = por %p161, %p162
    %p164 = scmp.ne.s32.totalorder %s153, %s156
    %p165 = scmp.eq.s32.totalorder %s17, 1
    %p166 = por %p164, %p165
    %p167 = scmp.ne.s32.totalorder %s156, %s157
    %p168 = scmp.eq.s32.totalorder %s17, 0
    %p169 = por %p167, %p168
    %p170 = scmp.ne.s32.totalorder %s156, %s157
    %p171 = scmp.eq.s32.totalorder %s18, 1
    %p172 = por %p170, %p171
    %p174 = scmp.ne.s32.totalorder %s157, %s173
    %p175 = scmp.eq.s32.totalorder %s18, 0
    %p176 = por %p174, %p175
    %p177 = scmp.le.s32.totalorder 1, %s12
    %p178 = scmp.lt.s32.totalorder %s12, 3
    %p179 = pnand %p177, %p178
    %p180 = pneg %p179
    // Predicated region
    $region9: #{decoder_trans_forward.5} parent=5 // pred_check
      _
    $region10: #{decoder_trans_forward.5} parent=5 // pred_check_branch
      %182 = sbr.rel (%p179) target = $region12
    $region11: #{decoder_trans_forward.5} parent=5 // pred_region
      %s183 = ssub.s32 %s12, 1
      // Predicated region
      $region13: #{decoder_trans_forward.5} parent=11 // pred_check
        %p184 = pneg %p59
      $region14: #{decoder_trans_forward.5} parent=11 // pred_check_branch
        %186 = sbr.rel (%p184) target = $region16
      $region15: #{decoder_trans_forward.5} parent=11 // pred_region
        _
      $region16: #{decoder_trans_forward.5} parent=11 // pred_fallthru
        _
      // Predicated region
      $region17: #{decoder_trans_forward.5} parent=11 // pred_check
        %p187 = pneg %p80
      $region18: #{decoder_trans_forward.5} parent=11 // pred_check_branch
        %189 = sbr.rel (%p187) target = $region20
      $region19: #{decoder_trans_forward.5} parent=11 // pred_region
        _
      $region20: #{decoder_trans_forward.5} parent=11 // pred_fallthru
        _
      // Predicated region
      $region21: #{decoder_trans_forward.5} parent=11 // pred_check
        %p190 = pneg %p101
      $region22: #{decoder_trans_forward.5} parent=11 // pred_check_branch
        %192 = sbr.rel (%p190) target = $region24
      $region23: #{decoder_trans_forward.5} parent=11 // pred_region
        _
      $region24: #{decoder_trans_forward.5} parent=11 // pred_fallthru
        _
      // Predicated region
      $region25: #{decoder_trans_forward.5} parent=11 // pred_check
        %p193 = pneg %p122
      $region26: #{decoder_trans_forward.5} parent=11 // pred_check_branch
        %195 = sbr.rel (%p193) target = $region28
      $region27: #{decoder_trans_forward.5} parent=11 // pred_region
        _
      $region28: #{decoder_trans_forward.5} parent=11 // pred_fallthru
        _
      // Predicated region
      $region29: #{decoder_trans_forward.5} parent=11 // pred_check
        %p196 = pneg %p143
      $region30: #{decoder_trans_forward.5} parent=11 // pred_check_branch
        %198 = sbr.rel (%p196) target = $region32
      $region31: #{decoder_trans_forward.5} parent=11 // pred_region
        _
      $region32: #{decoder_trans_forward.5} parent=11 // pred_fallthru
        _
    $region12: #{decoder_trans_forward.5} parent=5 // pred_fallthru
      _
    %p199 = scmp.lt.s32.totalorder %s12, 2
    // Predicated region
    $region33: #{decoder_trans_forward.5} parent=5 // pred_check
      %p200 = pneg %p199
    $region34: #{decoder_trans_forward.5} parent=5 // pred_check_branch
      %202 = sbr.rel (%p200) target = $region36
    $region35: #{decoder_trans_forward.5} parent=5 // pred_region
      // Predicated region
      $region37: #{decoder_trans_forward.5} parent=35 // pred_check
        %p203 = pneg %p32
      $region38: #{decoder_trans_forward.5} parent=35 // pred_check_branch
        %205 = sbr.rel (%p203) target = $region40
      $region39: #{decoder_trans_forward.5} parent=35 // pred_region
        %p206 = scmp.lt.s32.totalorder %s12, 1
        %s207 = scalar_select %p206, %s12, 1
        %s208 = smul.addr %s207, 8
        %s209 = scalar_lea.vmem %s0, %s208
      $region40: #{decoder_trans_forward.5} parent=35 // pred_fallthru
        _
    $region36: #{decoder_trans_forward.5} parent=5 // pred_fallthru
      _
    %p210 = scmp.le.s32.totalorder 1, %s12
    %p211 = scmp.lt.s32.totalorder %s12, 3
    %p212 = pnand %p210, %p211
    %p213 = pneg %p212
    // Predicated region
    $region41: #{decoder_trans_forward.5} parent=5 // pred_check
      _
    $region42: #{decoder_trans_forward.5} parent=5 // pred_check_branch
      %215 = sbr.rel (%p212) target = $region44
    $region43: #{decoder_trans_forward.5} parent=5 // pred_region
      %s216 = ssub.s32 %s12, 1
      %p217 = scmp.lt.s32.totalorder %s17, 1
      %s218 = scalar_select %p217, %s17, 1
      %s219 = smul.addr %s218, 8
      %s220 = scalar_lea.vmem %s0, %s219
      %p221 = pneg %p38
      %p222 = pneg %p35
      %p223 = pneg %p59
      %p224 = pneg %p56
      %p225 = pneg %p80
      %p226 = pneg %p77
      %p227 = pneg %p101
      %p228 = pneg %p98
      %p229 = pneg %p122
      %p230 = pneg %p119
      %p231 = pneg %p143
      %p232 = pneg %p140
      %p233 = pneg %p169
      %p234 = pneg %p166
      %p235 = scmp.lt.s32.totalorder %s17, 1
      %s236 = scalar_select %p235, %s17, 1
      %s237 = smul.addr %s236, 8
      %s238 = scalar_lea.vmem %s6, %s237
      %p239 = scmp.lt.s32.totalorder %s17, 1
      %s240 = scalar_select %p239, %s17, 1
      %s241 = smul.addr %s240, 8
      %s242 = scalar_lea.vmem %s0, %s241
      %p243 = scmp.lt.s32.totalorder %s17, 1
      %s244 = scalar_select %p243, %s17, 1
      %s245 = smul.addr %s244, 8
      %s246 = scalar_lea.vmem %s6, %s245
      %v248 = vld [vmem:[%s242] sm:$0xff]
      %v249 = vld [vmem:[%s2] sm:$0x1]
      %v250 = vld [vmem:[%s3] sm:$0x1]
      %vm251 = vcmask 261120
      %v252 = vsel %vm251, %v248, 0.0
      %253 = vadd.xlane.f32.xlu0 %v252
      %v254 = vpop.xlane.xlu0 %253
      %v255 = vmul.f32 %v254, 0.03125
      %v256 = vsub.f32 %v248, %v255
      %v257 = vmul.f32 %v256, %v256
      %v258 = vsel %vm251, %v257, 0.0
      %259 = vadd.xlane.f32.xlu0 %v258
      %v260 = vpop.xlane.xlu0 %259
      %v261 = vmul.f32 %v260, 0.03125
      %v262 = vadd.f32 %v261, 1e-05
      %v263 = vrsqrt.pop %v262
      %v264 = vmul.f32 %v263, %v262
      %v265 = vmul.f32 %v264, %v263
      %v266 = vmul.f32 0.5, %v265
      %v267 = vsub.f32 1.5, %v266
      %v268 = vmul.f32 %v263, %v267
      %vm269 = vweird.f32 %v262
      %vm270 = vweird.f32 %v263
      %vm271 = vmor %vm269, %vm270
      %v272 = vsel %vm271, %v263, %v268
      %v273 = vmul.f32 %v256, %v272
      %v275 = vperm.slane %v249, 0
      %v277 = vmul.f32 %v273, %v275
      %v279 = vperm.slane %v250, 0
      %v281 = vadd.f32 %v277, %v279
      %v282 = vpack.c.bf16 %v281, %v281
      %v283 = vld [vmem:[%s1] sm:$0xf]
      %v284 = vld [vmem:[%s1 + $0x4] sm:$0xf]
      %v285 = vld [vmem:[%s1 + $0x8] sm:$0xf]
      %v286 = vld [vmem:[%s1 + $0xc] sm:$0xf]
      %v291 = vunpack.c.l.b16 %v283
      %v292 = vunpack.c.l.b16 %v284
      %v293 = vunpack.c.l.b16 %v285
      %v294 = vunpack.c.l.b16 %v286
      %v295 = vpack.c.b16 %v292, %v291
      %v296 = vpack.c.b16 %v294, %v293
      %v300 = vsel %vm251, %v282, 0
      %302 = vmatpush.bf16.msra.mxu0 0
      %303 = vmatpush.bf16.msra.mxu0 0
      %304 = vmatpush.bf16.msra.mxu0 0
      %305 = vmatpush.bf16.msra.mxu0 0
      %306 = vmatpush.bf16.msra.mxu0 0
      %307 = vmatpush.bf16.msra.mxu0 0
      %308 = vmatpush.bf16.msra.mxu0 %v296
      %309 = vmatpush.bf16.msra.mxu0 %v295
      %310 = vmatmul.bf16.gmra.mxu0 %v300
      %v311 = vpop.f32.mrf.mxu0
      %v312 = vadd.f32 0.0, %v311
      %v313 = vpop.f32.mrf.mxu0
      %314 = vdwg.mxu0
      %v315 = vpack.c.bf16 %v312, %v312
      %v316 = vlaneseq
      %v317 = vshrl.u32 %v316, 7
      %v318 = vlaneseq
      %v319 = vand.u32 %v318, 127
      %vm320 = vcmp.le.s32.totalorder %v319, %v317
      %v322 = vunpack.c.l.b16 %v315
      %v323 = vpack.c.b16 %v322, %v322
      %324 = vrot.lane.b32.xlu0 %v323, 96
      %v325 = vpop.permute.xlu0 %324
      %vm326 = vcmask 64512
      %v328 = vsel %vm326, %v315, 0
      %v331 = vsel %vm326, %v325, 0
      %333 = vmatpush.bf16.xpose.msra.mxu0 0
      %334 = vmatpush.bf16.xpose.msra.mxu0 0
      %335 = vmatpush.bf16.xpose.msra.mxu0 0
      %336 = vmatpush.bf16.xpose.msra.mxu0 0
      %337 = vmatpush.bf16.xpose.msra.mxu0 0
      %338 = vmatpush.bf16.xpose.msra.mxu0 0
      %339 = vmatpush.bf16.xpose.msra.mxu0 0
      %340 = vmatpush.bf16.xpose.msra.mxu0 %v331
      %341 = vmatmul.bf16.gmra.mxu0 %v328
      %v342 = vpop.f32.mrf.mxu0
      %v343 = vadd.f32 0.0, %v342
      %v344 = vpop.f32.mrf.mxu0
      %345 = vdwg.mxu0
      %v346 = vsel %vm320, %v343, -1e+30
      %v347 = vsel %vm326, %v346, -inf
      %348 = vmax.xlane.f32.xlu0 %v347
      %v349 = vpop.xlane.xlu0 %348
      %v350 = vsub.f32 %v346, %v349
      %v351 = vmul.f32 %v350, 1.442695
      %v352 = vpow.pop %v351
      %v353 = vsel %vm326, %v352, 0.0
      %354 = vadd.xlane.f32.xlu0 %v353
      %v355 = vpop.xlane.xlu0 %354
      %v356 = vrcp.pop %v355
      %v357 = vmul.f32 %v352, %v356
      %v358 = vpack.c.bf16 %v357, %v357
      %359 = vrot.lane.b32.xlu0 %v323, 64
      %v360 = vpop.permute.xlu0 %359
      %v362 = vsel %vm326, %v358, 0
      %vm364 = vcmask 1043456
      %v366 = vsel %vm364, %v360, 0
      %368 = vmatpush.bf16.msra.mxu0 0
      %369 = vmatpush.bf16.msra.mxu0 0
      %370 = vmatpush.bf16.msra.mxu0 0
      %371 = vmatpush.bf16.msra.mxu0 0
      %372 = vmatpush.bf16.msra.mxu0 0
      %373 = vmatpush.bf16.msra.mxu0 0
      %374 = vmatpush.bf16.msra.mxu0 0
      %375 = vmatpush.bf16.msra.mxu0 %v366
      %376 = vmatmul.bf16.gmra.mxu0 %v362
      %v377 = vpop.f32.mrf.mxu0
      %v378 = vadd.f32 0.0, %v377
      %v379 = vpop.f32.mrf.mxu0
      %380 = vdwg.mxu0
      %381 = vst.msk [vmem:[#allocation2] sm:$0xff] %vm326, %v378
      %382 = vrot.lane.b32.xlu0 %v323, 120
      %v383 = vpop.permute.xlu0 %382
      %384 = vrot.lane.b32.xlu0 %v323, 88
      %v385 = vpop.permute.xlu0 %384
      %v387 = vsel %vm326, %v383, 0
      %v390 = vsel %vm326, %v385, 0
      %392 = vmatpush.bf16.xpose.msra.mxu0 0
      %393 = vmatpush.bf16.xpose.msra.mxu0 0
      %394 = vmatpush.bf16.xpose.msra.mxu0 0
      %395 = vmatpush.bf16.xpose.msra.mxu0 0
      %396 = vmatpush.bf16.xpose.msra.mxu0 0
      %397 = vmatpush.bf16.xpose.msra.mxu0 0
      %398 = vmatpush.bf16.xpose.msra.mxu0 0
      %399 = vmatpush.bf16.xpose.msra.mxu0 %v390
      %400 = vmatmul.bf16.gmra.mxu0 %v387
      %v401 = vpop.f32.mrf.mxu0
      %v402 = vadd.f32 0.0, %v401
      %v403 = vpop.f32.mrf.mxu0
      %404 = vdwg.mxu0
      %v405 = vsel %vm320, %v402, -1e+30
      %v406 = vsel %vm326, %v405, -inf
      %407 = vmax.xlane.f32.xlu0 %v406
      %v408 = vpop.xlane.xlu0 %407
      %v409 = vsub.f32 %v405, %v408
      %v410 = vmul.f32 %v409, 1.442695
      %v411 = vpow.pop %v410
      %v412 = vsel %vm326, %v411, 0.0
      %413 = vadd.xlane.f32.xlu0 %v412
      %v414 = vpop.xlane.xlu0 %413
      %v415 = vrcp.pop %v414
      %v416 = vmul.f32 %v411, %v415
      %v417 = vpack.c.bf16 %v416, %v416
      %418 = vrot.lane.b32.xlu0 %v323, 56
      %v419 = vpop.permute.xlu0 %418
      %v421 = vsel %vm326, %v417, 0
      %v424 = vsel %vm364, %v419, 0
      %426 = vmatpush.bf16.msra.mxu0 0
      %427 = vmatpush.bf16.msra.mxu0 0
      %428 = vmatpush.bf16.msra.mxu0 0
      %429 = vmatpush.bf16.msra.mxu0 0
      %430 = vmatpush.bf16.msra.mxu0 0
      %431 = vmatpush.bf16.msra.mxu0 0
      %432 = vmatpush.bf16.msra.mxu0 0
      %433 = vmatpush.bf16.msra.mxu0 %v424
      %434 = vmatmul.bf16.gmra.mxu0 %v421
      %v435 = vpop.f32.mrf.mxu0
      %v436 = vadd.f32 0.0, %v435
      %v437 = vpop.f32.mrf.mxu0
      %438 = vdwg.mxu0
      %440 = vrot.lane.b32.xlu0 %v436, 8
      %v441 = vpop.permute.xlu0 %440
      %vm443 = vcmask 130112
      %444 = vst.msk [vmem:[#allocation2] sm:$0xff] %vm443, %v441
      %445 = vrot.lane.b32.xlu0 %v323, 112
      %v446 = vpop.permute.xlu0 %445
      %447 = vrot.lane.b32.xlu0 %v323, 80
      %v448 = vpop.permute.xlu0 %447
      %v450 = vsel %vm326, %v446, 0
      %v453 = vsel %vm326, %v448, 0
      %455 = vmatpush.bf16.xpose.msra.mxu0 0
      %456 = vmatpush.bf16.xpose.msra.mxu0 0
      %457 = vmatpush.bf16.xpose.msra.mxu0 0
      %458 = vmatpush.bf16.xpose.msra.mxu0 0
      %459 = vmatpush.bf16.xpose.msra.mxu0 0
      %460 = vmatpush.bf16.xpose.msra.mxu0 0
      %461 = vmatpush.bf16.xpose.msra.mxu0 0
      %462 = vmatpush.bf16.xpose.msra.mxu0 %v453
      %463 = vmatmul.bf16.gmra.mxu0 %v450
      %v464 = vpop.f32.mrf.mxu0
      %v465 = vadd.f32 0.0, %v464
      %v466 = vpop.f32.mrf.mxu0
      %467 = vdwg.mxu0
      %v468 = vsel %vm320, %v465, -1e+30
      %v469 = vsel %vm326, %v468, -inf
      %470 = vmax.xlane.f32.xlu0 %v469
      %v471 = vpop.xlane.xlu0 %470
      %v472 = vsub.f32 %v468, %v471
      %v473 = vmul.f32 %v472, 1.442695
      %v474 = vpow.pop %v473
      %v475 = vsel %vm326, %v474, 0.0
      %476 = vadd.xlane.f32.xlu0 %v475
      %v477 = vpop.xlane.xlu0 %476
      %v478 = vrcp.pop %v477
      %v479 = vmul.f32 %v474, %v478
      %v480 = vpack.c.bf16 %v479, %v479
      %481 = vrot.lane.b32.xlu0 %v323, 48
      %v482 = vpop.permute.xlu0 %481
      %v484 = vsel %vm326, %v480, 0
      %v487 = vsel %vm364, %v482, 0
      %489 = vmatpush.bf16.msra.mxu0 0
      %490 = vmatpush.bf16.msra.mxu0 0
      %491 = vmatpush.bf16.msra.mxu0 0
      %492 = vmatpush.bf16.msra.mxu0 0
      %493 = vmatpush.bf16.msra.mxu0 0
      %494 = vmatpush.bf16.msra.mxu0 0
      %495 = vmatpush.bf16.msra.mxu0 0
      %496 = vmatpush.bf16.msra.mxu0 %v487
      %497 = vmatmul.bf16.gmra.mxu0 %v484
      %v498 = vpop.f32.mrf.mxu0
      %v499 = vadd.f32 0.0, %v498
      %v500 = vpop.f32.mrf.mxu0
      %501 = vdwg.mxu0
      %503 = vrot.lane.b32.xlu0 %v499, 16
      %v504 = vpop.permute.xlu0 %503
      %vm506 = vcmask 195712
      %507 = vst.msk [vmem:[#allocation2] sm:$0xff] %vm506, %v504
      %508 = vrot.lane.b32.xlu0 %v323, 104
      %v509 = vpop.permute.xlu0 %508
      %510 = vrot.lane.b32.xlu0 %v323, 72
      %v511 = vpop.permute.xlu0 %510
      %v513 = vsel %vm326, %v509, 0
      %v516 = vsel %vm326, %v511, 0
      %518 = vmatpush.bf16.xpose.msra.mxu0 0
      %519 = vmatpush.bf16.xpose.msra.mxu0 0
      %520 = vmatpush.bf16.xpose.msra.mxu0 0
      %521 = vmatpush.bf16.xpose.msra.mxu0 0
      %522 = vmatpush.bf16.xpose.msra.mxu0 0
      %523 = vmatpush.bf16.xpose.msra.mxu0 0
      %524 = vmatpush.bf16.xpose.msra.mxu0 0
      %525 = vmatpush.bf16.xpose.msra.mxu0 %v516
      %526 = vmatmul.bf16.gmra.mxu0 %v513
      %v527 = vpop.f32.mrf.mxu0
      %v528 = vadd.f32 0.0, %v527
      %v529 = vpop.f32.mrf.mxu0
      %530 = vdwg.mxu0
      %v531 = vsel %vm320, %v528, -1e+30
      %v532 = vsel %vm326, %v531, -inf
      %533 = vmax.xlane.f32.xlu0 %v532
      %v534 = vpop.xlane.xlu0 %533
      %v535 = vsub.f32 %v531, %v534
      %v536 = vmul.f32 %v535, 1.442695
      %v537 = vpow.pop %v536
      %v538 = vsel %vm326, %v537, 0.0
      %539 = vadd.xlane.f32.xlu0 %v538
      %v540 = vpop.xlane.xlu0 %539
      %v541 = vrcp.pop %v540
      %v542 = vmul.f32 %v537, %v541
      %v543 = vpack.c.bf16 %v542, %v542
      %544 = vrot.lane.b32.xlu0 %v323, 40
      %v545 = vpop.permute.xlu0 %544
      %v547 = vsel %vm326, %v543, 0
      %v550 = vsel %vm364, %v545, 0
      %552 = vmatpush.bf16.msra.mxu0 0
      %553 = vmatpush.bf16.msra.mxu0 0
      %554 = vmatpush.bf16.msra.mxu0 0
      %555 = vmatpush.bf16.msra.mxu0 0
      %556 = vmatpush.bf16.msra.mxu0 0
      %557 = vmatpush.bf16.msra.mxu0 0
      %558 = vmatpush.bf16.msra.mxu0 0
      %559 = vmatpush.bf16.msra.mxu0 %v550
      %560 = vmatmul.bf16.gmra.mxu0 %v547
      %v561 = vpop.f32.mrf.mxu0
      %v562 = vadd.f32 0.0, %v561
      %v563 = vpop.f32.mrf.mxu0
      %564 = vdwg.mxu0
      %566 = vrot.lane.b32.xlu0 %v562, 24
      %v567 = vpop.permute.xlu0 %566
      %vm569 = vcmask 261312
      %570 = vst.msk [vmem:[#allocation2] sm:$0xff] %vm569, %v567
      %v571 = vld [vmem:[#allocation2] sm:$0xff]
      %v572 = vadd.f32 %v281, %v571
      %v573 = vld [vmem:[%s4] sm:$0x1]
      %v574 = vld [vmem:[%s5] sm:$0x1]
      %v575 = vsel %vm251, %v572, 0.0
      %576 = vadd.xlane.f32.xlu0 %v575
      %v577 = vpop.xlane.xlu0 %576
      %v578 = vmul.f32 %v577, 0.03125
      %v579 = vsub.f32 %v572, %v578
      %v580 = vmul.f32 %v579, %v579
      %v581 = vsel %vm251, %v580, 0.0
      %582 = vadd.xlane.f32.xlu0 %v581
      %v583 = vpop.xlane.xlu0 %582
      %v584 = vmul.f32 %v583, 0.03125
      %v585 = vadd.f32 %v584, 1e-05
      %v586 = vrsqrt.pop %v585
      %v587 = vmul.f32 %v586, %v585
      %v588 = vmul.f32 %v587, %v586
      %v589 = vmul.f32 0.5, %v588
      %v590 = vsub.f32 1.5, %v589
      %v591 = vmul.f32 %v586, %v590
      %vm592 = vweird.f32 %v585
      %vm593 = vweird.f32 %v586
      %vm594 = vmor %vm592, %vm593
      %v595 = vsel %vm594, %v586, %v591
      %v596 = vmul.f32 %v579, %v595
      %v598 = vperm.slane %v573, 0
      %v600 = vmul.f32 %v596, %v598
      %v602 = vperm.slane %v574, 0
      %v604 = vadd.f32 %v600, %v602
      %v605 = vadd.f32 %v248, %v604
      %606 = vst.msk [vmem:[%s246] sm:$0xff] %vm251, %v605
      %p607 = scmp.lt.s32.totalorder %s17, 1
      %s608 = scalar_select %p607, %s17, 1
      %s609 = smul.addr %s608, 8
      %s610 = scalar_lea.vmem %s6, %s609
      // Predicated region
      $region45: #{decoder_trans_forward.5} parent=43 // pred_check
        %p611 = pneg %p166
      $region46: #{decoder_trans_forward.5} parent=43 // pred_check_branch
        %613 = sbr.rel (%p611) target = $region48
      $region47: #{decoder_trans_forward.5} parent=43 // pred_region
        _
      $region48: #{decoder_trans_forward.5} parent=43 // pred_fallthru
        _
    $region44: #{decoder_trans_forward.5} parent=5 // pred_fallthru
      _
    %p614 = scmp.le.s32.totalorder 2, %s12
    // Predicated region
    $region49: #{decoder_trans_forward.5} parent=5 // pred_check
      %p615 = pneg %p614
    $region50: #{decoder_trans_forward.5} parent=5 // pred_check_branch
      %617 = sbr.rel (%p615) target = $region52
    $region51: #{decoder_trans_forward.5} parent=5 // pred_region
      %s618 = ssub.s32 %s12, 2
      // Predicated region
      $region53: #{decoder_trans_forward.5} parent=51 // pred_check
        %p619 = pneg %p172
      $region54: #{decoder_trans_forward.5} parent=51 // pred_check_branch
        %621 = sbr.rel (%p619) target = $region56
      $region55: #{decoder_trans_forward.5} parent=51 // pred_region
        %p622 = scmp.lt.s32.totalorder %s18, 1
        %s623 = scalar_select %p622, %s18, 1
        %s624 = smul.addr %s623, 8
        %s625 = scalar_lea.vmem %s6, %s624
      $region56: #{decoder_trans_forward.5} parent=51 // pred_fallthru
        _
    $region52: #{decoder_trans_forward.5} parent=5 // pred_fallthru
      _
  $region6: #{decoder_trans_forward.5} parent=0 // loop_footer
    %s16 = sadd.s32 1, %s12
  $region7: #{decoder_trans_forward.5} parent=0 // loop_footer_branch
    %11 = sbr.rel target = $region3
  $region8: #{decoder_trans_forward.5} parent=0 // loop_exit
    _

// kernel: decoder_trans_forward.6
$region0: #{decoder_trans_forward.6}
  #allocation0 [shape = 'u32[]', space=smem, size = 0x4, offset = 0x4, fixed_abs, tag = 'smem constant byte address 0x4 - core index']
  #allocation1 [shape = 'u32[72,128]{1,0:T(1,128)}', space=vmem, size = 0x9000, scoped, tag = 'internal scratch']
  #allocation2 [shape = 'bf16[16,32]{1,0:T(8,128)(2,1)}', space=vmem, size = 0x1000, scoped, tag = 'scratch operand']
  #allocation3 [shape = 'f32[16,32]{1,0:T(8,128)}', space=vmem, size = 0x2000, scoped, tag = 'scratch operand']
  %s0 = inlined_call_operand.vmem [shape: f32[16,32], index: 0, kind: input, shape index: {}]
  %s1 = inlined_call_operand.vmem [shape: f32[1,32], index: 1, kind: input, shape index: {}]
  %s2 = inlined_call_operand.vmem [shape: f32[1,32], index: 2, kind: input, shape index: {}]
  %s3 = inlined_call_operand.vmem [shape: bf16[32,128], index: 3, kind: input, shape index: {}]
  %s4 = inlined_call_operand.vmem [shape: f32[1,128], index: 4, kind: input, shape index: {}]
  %s5 = inlined_call_operand.vmem [shape: bf16[128,32], index: 5, kind: input, shape index: {}]
  %s6 = inlined_call_operand.vmem [shape: f32[1,32], index: 6, kind: input, shape index: {}]
  %s7 = inlined_call_operand.vmem [shape: f32[16,32], index: 7, kind: output, shape index: {}]
  %s8 = sld [smem:[#allocation0]]
  $region46: #{decoder_trans_forward.6} parent=0
    _
  %s10 = ssub.s32 1, %s8
  %s11 = scalar_select 0, %s10, %s8
  // Predicated region
  $region2: #{decoder_trans_forward.6} parent=0 // pred_check
    _
  $region3: #{decoder_trans_forward.6} parent=0 // pred_check_branch
    %13 = sbr.rel (0) target = $region5
  $region4: #{decoder_trans_forward.6} parent=0 // pred_region
    _
  $region5: #{decoder_trans_forward.6} parent=0 // pred_fallthru
    _
  // Predicated region
  $region6: #{decoder_trans_forward.6} parent=0 // pred_check
    _
  $region7: #{decoder_trans_forward.6} parent=0 // pred_check_branch
    %15 = sbr.rel (0) target = $region9
  $region8: #{decoder_trans_forward.6} parent=0 // pred_region
    _
  $region9: #{decoder_trans_forward.6} parent=0 // pred_fallthru
    _
  // Predicated region
  $region10: #{decoder_trans_forward.6} parent=0 // pred_check
    _
  $region11: #{decoder_trans_forward.6} parent=0 // pred_check_branch
    %17 = sbr.rel (0) target = $region13
  $region12: #{decoder_trans_forward.6} parent=0 // pred_region
    _
  $region13: #{decoder_trans_forward.6} parent=0 // pred_fallthru
    _
  // Predicated region
  $region14: #{decoder_trans_forward.6} parent=0 // pred_check
    _
  $region15: #{decoder_trans_forward.6} parent=0 // pred_check_branch
    %19 = sbr.rel (0) target = $region17
  $region16: #{decoder_trans_forward.6} parent=0 // pred_region
    _
  $region17: #{decoder_trans_forward.6} parent=0 // pred_fallthru
    _
  // Predicated region
  $region18: #{decoder_trans_forward.6} parent=0 // pred_check
    _
  $region19: #{decoder_trans_forward.6} parent=0 // pred_check_branch
    %21 = sbr.rel (0) target = $region21
  $region20: #{decoder_trans_forward.6} parent=0 // pred_region
    _
  $region21: #{decoder_trans_forward.6} parent=0 // pred_fallthru
    _
  // Predicated region
  $region22: #{decoder_trans_forward.6} parent=0 // pred_check
    _
  $region23: #{decoder_trans_forward.6} parent=0 // pred_check_branch
    %23 = sbr.rel (0) target = $region25
  $region24: #{decoder_trans_forward.6} parent=0 // pred_region
    _
  $region25: #{decoder_trans_forward.6} parent=0 // pred_fallthru
    _
  // Predicated region
  $region26: #{decoder_trans_forward.6} parent=0 // pred_check
    _
  $region27: #{decoder_trans_forward.6} parent=0 // pred_check_branch
    %25 = sbr.rel (0) target = $region29
  $region28: #{decoder_trans_forward.6} parent=0 // pred_region
    _
  $region29: #{decoder_trans_forward.6} parent=0 // pred_fallthru
    _
  %p27 = scmp.eq.s32.totalorder 0, 0
  // Predicated region
  $region30: #{decoder_trans_forward.6} parent=0 // pred_check
    %p28 = pneg %p27
  $region31: #{decoder_trans_forward.6} parent=0 // pred_check_branch
    %30 = sbr.rel (%p28) target = $region33
  $region32: #{decoder_trans_forward.6} parent=0 // pred_region
    %v31 = vld [vmem:[%s0] sm:$0xff]
    %v32 = vld [vmem:[%s0 + $0x8] sm:$0xff]
    %v33 = vld [vmem:[%s1] sm:$0x1]
    %v34 = vld [vmem:[%s2] sm:$0x1]
    %vm35 = vcmask 261120
    %v36 = vsel %vm35, %v31, 0.0
    %37 = vadd.xlane.f32.xlu0 %v36
    %v38 = vpop.xlane.xlu0 %37
    %v39 = vsel %vm35, %v32, 0.0
    %40 = vadd.xlane.f32.xlu0 %v39
    %v41 = vpop.xlane.xlu0 %40
    %v42 = vmul.f32 %v38, 0.03125
    %v43 = vmul.f32 %v41, 0.03125
    %v44 = vsub.f32 %v31, %v42
    %v45 = vsub.f32 %v32, %v43
    %v46 = vmul.f32 %v44, %v44
    %v47 = vmul.f32 %v45, %v45
    %v48 = vsel %vm35, %v46, 0.0
    %49 = vadd.xlane.f32.xlu0 %v48
    %v50 = vpop.xlane.xlu0 %49
    %v51 = vsel %vm35, %v47, 0.0
    %52 = vadd.xlane.f32.xlu0 %v51
    %v53 = vpop.xlane.xlu0 %52
    %v54 = vmul.f32 %v50, 0.03125
    %v55 = vmul.f32 %v53, 0.03125
    %v56 = vadd.f32 %v54, 1e-05
    %v57 = vadd.f32 %v55, 1e-05
    %v58 = vrsqrt.pop %v56
    %v59 = vmul.f32 %v58, %v56
    %v60 = vmul.f32 %v59, %v58
    %v61 = vmul.f32 0.5, %v60
    %v62 = vsub.f32 1.5, %v61
    %v63 = vmul.f32 %v58, %v62
    %vm64 = vweird.f32 %v56
    %vm65 = vweird.f32 %v58
    %vm66 = vmor %vm64, %vm65
    %v67 = vsel %vm66, %v58, %v63
    %v68 = vrsqrt.pop %v57
    %v69 = vmul.f32 %v68, %v57
    %v70 = vmul.f32 %v69, %v68
    %v71 = vmul.f32 0.5, %v70
    %v72 = vsub.f32 1.5, %v71
    %v73 = vmul.f32 %v68, %v72
    %vm74 = vweird.f32 %v57
    %vm75 = vweird.f32 %v68
    %vm76 = vmor %vm74, %vm75
    %v77 = vsel %vm76, %v68, %v73
    %v78 = vmul.f32 %v44, %v67
    %v79 = vmul.f32 %v45, %v77
    %v81 = vperm.slane %v33, 0
    %v83 = vmul.f32 %v78, %v81
    %v84 = vmul.f32 %v79, %v81
    %v86 = vperm.slane %v34, 0
    %v88 = vadd.f32 %v83, %v86
    %v89 = vadd.f32 %v84, %v86
    %v90 = vpack.c.bf16 %v88, %v88
    %v91 = vpack.c.bf16 %v89, %v89
    %vm92 = vcmask 257024
    %93 = vst.msk [vmem:[#allocation2] sm:$0xf] %vm92, %v90
    %94 = vst.msk [vmem:[#allocation2 + $0x4] sm:$0xf] %vm92, %v91
    %95 = vst.msk [vmem:[#allocation3] sm:$0xff] %vm35, 0.0
    %96 = vst.msk [vmem:[#allocation3 + $0x8] sm:$0xff] %vm35, 0.0
  $region33: #{decoder_trans_forward.6} parent=0 // pred_fallthru
    _
  %v97 = vld [vmem:[#allocation2] sm:$0xf]
  %v98 = vld [vmem:[#allocation2 + $0x4] sm:$0xf]
  %v99 = vld [vmem:[%s3] sm:$0xf]
  %v100 = vld [vmem:[%s3 + $0x4] sm:$0xf]
  %v101 = vld [vmem:[%s3 + $0x8] sm:$0xf]
  %v102 = vld [vmem:[%s3 + $0xc] sm:$0xf]
  %v103 = vld [vmem:[%s4] sm:$0x1]
  %v105 = vperm.slane %v103, 0
  %v109 = vunpack.c.l.b16 %v97
  %v110 = vunpack.c.l.b16 %v98
  %v111 = vpack.c.b16 %v110, %v109
  %v116 = vunpack.c.l.b16 %v99
  %v117 = vunpack.c.l.b16 %v100
  %v118 = vunpack.c.l.b16 %v101
  %v119 = vunpack.c.l.b16 %v102
  %v120 = vpack.c.b16 %v117, %v116
  %v121 = vpack.c.b16 %v119, %v118
  %vm124 = vcmask 261120
  %v126 = vsel %vm124, %v111, 0
  %128 = vmatpush.bf16.msra.mxu0 0
  %129 = vmatpush.bf16.msra.mxu0 0
  %130 = vmatpush.bf16.msra.mxu0 0
  %131 = vmatpush.bf16.msra.mxu0 0
  %132 = vmatpush.bf16.msra.mxu0 0
  %133 = vmatpush.bf16.msra.mxu0 0
  %134 = vmatpush.bf16.msra.mxu0 %v121
  %135 = vmatpush.bf16.msra.mxu0 %v120
  %136 = vmatmul.bf16.gmra.mxu0 %v126
  %v137 = vpop.f32.mrf.mxu0
  %v138 = vadd.f32 %v105, %v137
  %v139 = vpop.f32.mrf.mxu0
  %v140 = vadd.f32 %v105, %v139
  %141 = vdwg.mxu0
  %v142 = vmax.f32 %v138, 0.0
  %v143 = vmax.f32 %v140, 0.0
  %v144 = vld [vmem:[#allocation3] sm:$0xff]
  %v145 = vld [vmem:[#allocation3 + $0x8] sm:$0xff]
  %v146 = vpack.c.bf16 %v143, %v142
  %v147 = vld [vmem:[%s5] sm:$0xf]
  %v148 = vld [vmem:[%s5 + $0x4] sm:$0xf]
  %v149 = vld [vmem:[%s5 + $0x8] sm:$0xf]
  %v150 = vld [vmem:[%s5 + $0xc] sm:$0xf]
  %v151 = vld [vmem:[%s5 + $0x10] sm:$0xf]
  %v152 = vld [vmem:[%s5 + $0x14] sm:$0xf]
  %v153 = vld [vmem:[%s5 + $0x18] sm:$0xf]
  %v154 = vld [vmem:[%s5 + $0x1c] sm:$0xf]
  %v155 = vld [vmem:[%s5 + $0x20] sm:$0xf]
  %v156 = vld [vmem:[%s5 + $0x24] sm:$0xf]
  %v157 = vld [vmem:[%s5 + $0x28] sm:$0xf]
  %v158 = vld [vmem:[%s5 + $0x2c] sm:$0xf]
  %v159 = vld [vmem:[%s5 + $0x30] sm:$0xf]
  %v160 = vld [vmem:[%s5 + $0x34] sm:$0xf]
  %v161 = vld [vmem:[%s5 + $0x38] sm:$0xf]
  %v162 = vld [vmem:[%s5 + $0x3c] sm:$0xf]
  %v179 = vunpack.c.l.b16 %v147
  %v180 = vunpack.c.l.b16 %v148
  %v181 = vunpack.c.l.b16 %v149
  %v182 = vunpack.c.l.b16 %v150
  %v183 = vunpack.c.l.b16 %v151
  %v184 = vunpack.c.l.b16 %v152
  %v185 = vunpack.c.l.b16 %v153
  %v186 = vunpack.c.l.b16 %v154
  %v187 = vunpack.c.l.b16 %v155
  %v188 = vunpack.c.l.b16 %v156
  %v189 = vunpack.c.l.b16 %v157
  %v190 = vunpack.c.l.b16 %v158
  %v191 = vunpack.c.l.b16 %v159
  %v192 = vunpack.c.l.b16 %v160
  %v193 = vunpack.c.l.b16 %v161
  %v194 = vunpack.c.l.b16 %v162
  %v195 = vpack.c.b16 %v180, %v179
  %v196 = vpack.c.b16 %v182, %v181
  %v197 = vpack.c.b16 %v184, %v183
  %v198 = vpack.c.b16 %v186, %v185
  %v199 = vpack.c.b16 %v188, %v187
  %v200 = vpack.c.b16 %v190, %v189
  %v201 = vpack.c.b16 %v192, %v191
  %v202 = vpack.c.b16 %v194, %v193
  %211 = vmatpush.bf16.msra.mxu0 %v202
  %212 = vmatpush.bf16.msra.mxu0 %v201
  %213 = vmatpush.bf16.msra.mxu0 %v200
  %214 = vmatpush.bf16.msra.mxu0 %v199
  %215 = vmatpush.bf16.msra.mxu0 %v198
  %216 = vmatpush.bf16.msra.mxu0 %v197
  %217 = vmatpush.bf16.msra.mxu0 %v196
  %218 = vmatpush.bf16.msra.mxu0 %v195
  %219 = vmatmul.bf16.gmra.mxu0 %v146
  %v220 = vpop.f32.mrf.mxu0
  %v221 = vadd.f32 0.0, %v220
  %v222 = vpop.f32.mrf.mxu0
  %v223 = vadd.f32 0.0, %v222
  %224 = vdwg.mxu0
  %v225 = vadd.f32 %v144, %v221
  %v226 = vadd.f32 %v145, %v223
  %227 = vst.msk [vmem:[#allocation3] sm:$0xff] %vm124, %v225
  %228 = vst.msk [vmem:[#allocation3 + $0x8] sm:$0xff] %vm124, %v226
  // Predicated region
  $region34: #{decoder_trans_forward.6} parent=0 // pred_check
    %p229 = pneg %p27
  $region35: #{decoder_trans_forward.6} parent=0 // pred_check_branch
    %231 = sbr.rel (%p229) target = $region37
  $region36: #{decoder_trans_forward.6} parent=0 // pred_region
    %v232 = vld [vmem:[%s0] sm:$0xff]
    %v233 = vld [vmem:[%s0 + $0x8] sm:$0xff]
    %v234 = vld [vmem:[#allocation3] sm:$0xff]
    %v235 = vld [vmem:[#allocation3 + $0x8] sm:$0xff]
    %v236 = vadd.f32 %v232, %v234
    %v237 = vadd.f32 %v233, %v235
    %v238 = vld [vmem:[%s6] sm:$0x1]
    %v240 = vperm.slane %v238, 0
    %v242 = vadd.f32 %v236, %v240
    %v243 = vadd.f32 %v237, %v240
    %244 = vst.msk [vmem:[%s7] sm:$0xff] %vm124, %v242
    %245 = vst.msk [vmem:[%s7 + $0x8] sm:$0xff] %vm124, %v243
  $region37: #{decoder_trans_forward.6} parent=0 // pred_fallthru
    _
  // Predicated region
  $region38: #{decoder_trans_forward.6} parent=0 // pred_check
    _
  $region39: #{decoder_trans_forward.6} parent=0 // pred_check_branch
    %247 = sbr.rel (0) target = $region41
  $region40: #{decoder_trans_forward.6} parent=0 // pred_region
    _
  $region41: #{decoder_trans_forward.6} parent=0 // pred_fallthru
    _
  // Predicated region
  $region42: #{decoder_trans_forward.6} parent=0 // pred_check
    _
  $region43: #{decoder_trans_forward.6} parent=0 // pred_check_branch
    %249 = sbr.rel (0) target = $region45
  $region44: #{decoder_trans_forward.6} parent=0 // pred_region
    _
  $region45: #{decoder_trans_forward.6} parent=0 // pred_fallthru
    _

// kernel: decoder_trans_forward.9
$region0: #{decoder_trans_forward.9}
  #allocation0 [shape = 'u32[]', space=smem, size = 0x4, offset = 0x4, fixed_abs, tag = 'smem constant byte address 0x4 - core index']
  #allocation1 [shape = 'u32[72,128]{1,0:T(1,128)}', space=vmem, size = 0x9000, scoped, tag = 'internal scratch']
  #allocation2 [shape = 'bf16[16,32]{1,0:T(8,128)(2,1)}', space=vmem, size = 0x1000, scoped, tag = 'scratch operand']
  %s0 = inlined_call_operand.vmem [shape: f32[16,32], index: 0, kind: input, shape index: {}]
  %s1 = inlined_call_operand.vmem [shape: f32[1,32], index: 1, kind: input, shape index: {}]
  %s2 = inlined_call_operand.vmem [shape: f32[1,32], index: 2, kind: input, shape index: {}]
  %s3 = inlined_call_operand.vmem [shape: bf16[32,16], index: 3, kind: input, shape index: {}]
  %s4 = inlined_call_operand.vmem [shape: f32[1,16], index: 4, kind: input, shape index: {}]
  %s5 = inlined_call_operand.hbm [shape: f32[16,16], index: 5, kind: output, shape index: {}]
  %s6 = sld [smem:[#allocation0]]
  $region34: #{decoder_trans_forward.9} parent=0
    _
  %s8 = ssub.s32 1, %s6
  %s9 = scalar_select 0, %s8, %s6
  $region1: #{decoder_trans_forward.9} parent=0
    #allocation3 [shape = 'u8[8192]{0}', space=vmem, size = 0x2000, scoped, tag = 'output window, operand 0, single buffered']
    #allocation4 [shape = 's32[1]{0}', space=sflag, size = 0x4, scoped, tag = 'scoped memory for decoder_trans_forward.9']
    %10 = vsyncpa [#allocation4], 0
    // Predicated region
    $region2: #{decoder_trans_forward.9} parent=1 // pred_check
      _
    $region3: #{decoder_trans_forward.9} parent=1 // pred_check_branch
      %12 = sbr.rel (0) target = $region5
    $region4: #{decoder_trans_forward.9} parent=1 // pred_region
      _
    $region5: #{decoder_trans_forward.9} parent=1 // pred_fallthru
      _
    // Predicated region
    $region6: #{decoder_trans_forward.9} parent=1 // pred_check
      _
    $region7: #{decoder_trans_forward.9} parent=1 // pred_check_branch
      %14 = sbr.rel (0) target = $region9
    $region8: #{decoder_trans_forward.9} parent=1 // pred_region
      _
    $region9: #{decoder_trans_forward.9} parent=1 // pred_fallthru
      _
    // Predicated region
    $region10: #{decoder_trans_forward.9} parent=1 // pred_check
      _
    $region11: #{decoder_trans_forward.9} parent=1 // pred_check_branch
      %16 = sbr.rel (0) target = $region13
    $region12: #{decoder_trans_forward.9} parent=1 // pred_region
      _
    $region13: #{decoder_trans_forward.9} parent=1 // pred_fallthru
      _
    // Predicated region
    $region14: #{decoder_trans_forward.9} parent=1 // pred_check
      _
    $region15: #{decoder_trans_forward.9} parent=1 // pred_check_branch
      %18 = sbr.rel (0) target = $region17
    $region16: #{decoder_trans_forward.9} parent=1 // pred_region
      _
    $region17: #{decoder_trans_forward.9} parent=1 // pred_fallthru
      _
    // Predicated region
    $region18: #{decoder_trans_forward.9} parent=1 // pred_check
      _
    $region19: #{decoder_trans_forward.9} parent=1 // pred_check_branch
      %20 = sbr.rel (0) target = $region21
    $region20: #{decoder_trans_forward.9} parent=1 // pred_region
      _
    $region21: #{decoder_trans_forward.9} parent=1 // pred_fallthru
      _
    %p22 = scmp.eq.s32.totalorder 0, 0
    // Predicated region
    $region22: #{decoder_trans_forward.9} parent=1 // pred_check
      %p23 = pneg %p22
    $region23: #{decoder_trans_forward.9} parent=1 // pred_check_branch
      %25 = sbr.rel (%p23) target = $region25
    $region24: #{decoder_trans_forward.9} parent=1 // pred_region
      %v26 = vld [vmem:[%s0] sm:$0xff]
      %v27 = vld [vmem:[%s0 + $0x8] sm:$0xff]
      %v28 = vld [vmem:[%s1] sm:$0x1]
      %v29 = vld [vmem:[%s2] sm:$0x1]
      %vm30 = vcmask 261120
      %v31 = vsel %vm30, %v26, 0.0
      %32 = vadd.xlane.f32.xlu0 %v31
      %v33 = vpop.xlane.xlu0 %32
      %v34 = vsel %vm30, %v27, 0.0
      %35 = vadd.xlane.f32.xlu0 %v34
      %v36 = vpop.xlane.xlu0 %35
      %v37 = vmul.f32 %v33, 0.03125
      %v38 = vmul.f32 %v36, 0.03125
      %v39 = vsub.f32 %v26, %v37
      %v40 = vsub.f32 %v27, %v38
      %v41 = vmul.f32 %v39, %v39
      %v42 = vmul.f32 %v40, %v40
      %v43 = vsel %vm30, %v41, 0.0
      %44 = vadd.xlane.f32.xlu0 %v43
      %v45 = vpop.xlane.xlu0 %44
      %v46 = vsel %vm30, %v42, 0.0
      %47 = vadd.xlane.f32.xlu0 %v46
      %v48 = vpop.xlane.xlu0 %47
      %v49 = vmul.f32 %v45, 0.03125
      %v50 = vmul.f32 %v48, 0.03125
      %v51 = vadd.f32 %v49, 1e-05
      %v52 = vadd.f32 %v50, 1e-05
      %v53 = vrsqrt.pop %v51
      %v54 = vmul.f32 %v53, %v51
      %v55 = vmul.f32 %v54, %v53
      %v56 = vmul.f32 0.5, %v55
      %v57 = vsub.f32 1.5, %v56
      %v58 = vmul.f32 %v53, %v57
      %vm59 = vweird.f32 %v51
      %vm60 = vweird.f32 %v53
      %vm61 = vmor %vm59, %vm60
      %v62 = vsel %vm61, %v53, %v58
      %v63 = vrsqrt.pop %v52
      %v64 = vmul.f32 %v63, %v52
      %v65 = vmul.f32 %v64, %v63
      %v66 = vmul.f32 0.5, %v65
      %v67 = vsub.f32 1.5, %v66
      %v68 = vmul.f32 %v63, %v67
      %vm69 = vweird.f32 %v52
      %vm70 = vweird.f32 %v63
      %vm71 = vmor %vm69, %vm70
      %v72 = vsel %vm71, %v63, %v68
      %v73 = vmul.f32 %v39, %v62
      %v74 = vmul.f32 %v40, %v72
      %v76 = vperm.slane %v28, 0
      %v78 = vmul.f32 %v73, %v76
      %v79 = vmul.f32 %v74, %v76
      %v81 = vperm.slane %v29, 0
      %v83 = vadd.f32 %v78, %v81
      %v84 = vadd.f32 %v79, %v81
      %v85 = vpack.c.bf16 %v83, %v83
      %v86 = vpack.c.bf16 %v84, %v84
      %vm87 = vcmask 257024
      %88 = vst.msk [vmem:[#allocation2] sm:$0xf] %vm87, %v85
      %89 = vst.msk [vmem:[#allocation2 + $0x4] sm:$0xf] %vm87, %v86
    $region25: #{decoder_trans_forward.9} parent=1 // pred_fallthru
      _
    %v90 = vld [vmem:[#allocation2] sm:$0xf]
    %v91 = vld [vmem:[#allocation2 + $0x4] sm:$0xf]
    %v92 = vld [vmem:[%s3] sm:$0xf]
    %v93 = vld [vmem:[%s3 + $0x4] sm:$0xf]
    %v94 = vld [vmem:[%s3 + $0x8] sm:$0xf]
    %v95 = vld [vmem:[%s3 + $0xc] sm:$0xf]
    %v96 = vld [vmem:[%s4] sm:$0x1]
    %v98 = vperm.slane %v96, 0
    %v102 = vunpack.c.l.b16 %v90
    %v103 = vunpack.c.l.b16 %v91
    %v104 = vpack.c.b16 %v103, %v102
    %v109 = vunpack.c.l.b16 %v92
    %v110 = vunpack.c.l.b16 %v93
    %v111 = vunpack.c.l.b16 %v94
    %v112 = vunpack.c.l.b16 %v95
    %v113 = vpack.c.b16 %v110, %v109
    %v114 = vpack.c.b16 %v112, %v111
    %vm117 = vcmask 261120
    %v119 = vsel %vm117, %v104, 0
    %121 = vmatpush.bf16.msra.mxu0 0
    %122 = vmatpush.bf16.msra.mxu0 0
    %123 = vmatpush.bf16.msra.mxu0 0
    %124 = vmatpush.bf16.msra.mxu0 0
    %125 = vmatpush.bf16.msra.mxu0 0
    %126 = vmatpush.bf16.msra.mxu0 0
    %127 = vmatpush.bf16.msra.mxu0 %v114
    %128 = vmatpush.bf16.msra.mxu0 %v113
    %129 = vmatmul.bf16.gmra.mxu0 %v119
    %v130 = vpop.f32.mrf.mxu0
    %v131 = vadd.f32 %v98, %v130
    %v132 = vpop.f32.mrf.mxu0
    %v133 = vadd.f32 %v98, %v132
    %134 = vdwg.mxu0
    %vm135 = vcmask 130048
    %136 = vst.msk [vmem:[#allocation3] sm:$0xff] %vm135, %v131
    %137 = vst.msk [vmem:[#allocation3 + $0x8] sm:$0xff] %vm135, %v133
    // Predicated region
    $region26: #{decoder_trans_forward.9} parent=1 // pred_check
      _
    $region27: #{decoder_trans_forward.9} parent=1 // pred_check_branch
      %139 = sbr.rel (0) target = $region29
    $region28: #{decoder_trans_forward.9} parent=1 // pred_region
      %141 = vsyncadd [#allocation4], 0
      %s142 = sshll.u32 [#allocation3], 4
      %s143 = int_to_ptr.vmem [resolvable:$true] %s142
      %s144 = sshll.u32 %s5, 4
      %s145 = int_to_ptr.hbm [resolvable:$true] %s144
      %150 = dma.vmem_to_hbm [thread:$0]  %s143, 256, %s145, [#allocation4], 128, 128, 8
    $region29: #{decoder_trans_forward.9} parent=1 // pred_fallthru
      _
    // Predicated region
    $region30: #{decoder_trans_forward.9} parent=1 // pred_check
      _
    $region31: #{decoder_trans_forward.9} parent=1 // pred_check_branch
      %152 = sbr.rel (0) target = $region33
    $region32: #{decoder_trans_forward.9} parent=1 // pred_region
      %154 = dma.done [#allocation4], 256
    $region33: #{decoder_trans_forward.9} parent=1 // pred_fallthru
      _
    %155 = vsyncpa [#allocation4], 1

</llo_original>
